<compile_context>
chip_gen: v5e
topology: v5e:2x2
jax: 0.10.0
libtpu: 0.0.40
codegen_flags: <defaults>
</compile_context>

<pallas_src>
import functools

import jax
import jax.numpy as jnp
from jax.experimental import pallas as pl
from jax.experimental.pallas import tpu as pltpu


# ----------------------------------------------------------------------------
# Pallas kernel: whole-K GEMM (bf16 in, f32 acc) + optional bias/act epilogue
# ----------------------------------------------------------------------------
def _gemm_kernel(*refs, act, has_bias):
    if has_bias:
        x_ref, w_ref, b_ref, o_ref = refs
    else:
        x_ref, w_ref, o_ref = refs
    y = jnp.dot(x_ref[...], w_ref[...], preferred_element_type=jnp.float32)
    if has_bias:
        y = y + b_ref[...]
    if act == "relu":
        y = jnp.maximum(y, 0.0)
    elif act == "tanh":
        y = jnp.tanh(y)
    o_ref[...] = y.astype(o_ref.dtype)


def _round_up(x, m):
    return (x + m - 1) // m * m


def _pick_tm(M, K, N):
    """Largest M tile that divides M, fits a conservative VMEM budget, and
    (when possible) leaves >=2 grid steps so both v7x TensorCores get work."""
    budget = 12 * 1024 * 1024

    def vmem_bytes(tm):
        # double-buffered bf16 x tile + bf16 weights + f32 bias + f32 out tile
        return 2 * (tm * K * 2 + K * N * 2 + N * 4 + tm * N * 4)

    best = None
    for tm in (1024, 512, 256, 128, 64, 32, 16, 8):
        if tm > M or M % tm != 0 or vmem_bytes(tm) > budget:
            continue
        if best is None:
            best = tm
        if M // tm >= 2:
            return tm
    return best if best is not None else M


def fused_gemm(x_flat, w_mat, bias_cols=None, act="none"):
    """out = act(x_flat @ w_mat + bias_cols); bf16 MXU matmul, f32 accumulation.

    x_flat: (M, K) f32, w_mat: (K, N) f32, bias_cols: (1, N) f32 or None.
    N is zero-padded to a multiple of 128 (lane-dense stores / full MXU cols);
    K is kept whole (no K grid axis -> no accumulator scratch, no per-step
    pipeline overhead at these sizes).
    """
    M, K = x_flat.shape
    _, N = w_mat.shape
    n_pad = _round_up(N, 128)
    if n_pad != N:
        w_mat = jnp.pad(w_mat, ((0, 0), (0, n_pad - N)))
        if bias_cols is not None:
            bias_cols = jnp.pad(bias_cols, ((0, 0), (0, n_pad - N)))

    x_bf = x_flat.astype(jnp.bfloat16)
    w_bf = w_mat.astype(jnp.bfloat16)

    tm = _pick_tm(M, K, n_pad)
    grid = (M // tm,)

    in_specs = [
        pl.BlockSpec((tm, K), lambda i: (i, 0)),     # whole-K activation tile
        pl.BlockSpec((K, n_pad), lambda i: (0, 0)),  # full (BN-scaled) weights
    ]
    args = [x_bf, w_bf]
    if bias_cols is not None:
        in_specs.append(pl.BlockSpec((1, n_pad), lambda i: (0, 0)))
        args.append(bias_cols.astype(jnp.float32))

    kernel = functools.partial(_gemm_kernel, act=act,
                               has_bias=bias_cols is not None)
    out = pl.pallas_call(
        kernel,
        out_shape=jax.ShapeDtypeStruct((M, n_pad), jnp.float32),
        grid_spec=pltpu.PrefetchScalarGridSpec(
            num_scalar_prefetch=0,
            grid=grid,
            in_specs=in_specs,
            out_specs=pl.BlockSpec((tm, n_pad), lambda i: (i, 0)),
        ),
        compiler_params=pltpu.CompilerParams(
            dimension_semantics=("parallel",),
            vmem_limit_bytes=32 * 1024 * 1024),
    )(*args)
    if n_pad != N:
        out = out[:, :N]
    return out


# ----------------------------------------------------------------------------
# Plain-JAX glue: col2im overlap-add for the output-side ConvTranspose GEMM
# ----------------------------------------------------------------------------
def _col2im(y_cols, B, H, W, Cout, k, stride, pad):
    """Scatter-add GEMM columns (co, kh, kw) into the NHWC output."""
    y = y_cols.reshape(B, H, W, Cout, k, k)
    fh = (H - 1) * stride + k
    fw = (W - 1) * stride + k
    out = jnp.zeros((B, fh, fw, Cout), jnp.float32)
    for kh in range(k):
        for kw in range(k):
            out = out.at[:, kh:kh + (H - 1) * stride + 1:stride,
                            kw:kw + (W - 1) * stride + 1:stride, :].add(
                                y[:, :, :, :, kh, kw])
    return out[:, pad:fh - pad, pad:fw - pad, :]


# ----------------------------------------------------------------------------
# Generator forward (NHWC internally, NCHW at the boundaries)
# ----------------------------------------------------------------------------
def netG_forward(z, params):
    B, nz = z.shape[0], z.shape[1]
    x = z.reshape(B, 1, 1, nz)                       # (B,nz,1,1) NCHW -> NHWC (free)
    layer_cfg = [
        ("w1", "bn1", 1, 0, "relu"),
        ("w2", "bn2", 2, 1, "relu"),
        ("w3", "bn3", 2, 1, "relu"),
        ("w4", "bn4", 2, 1, "relu"),
        ("w5", None, 2, 1, "tanh"),
    ]
    for w_name, bn_name, stride, pad, act in layer_cfg:
        w = params[w_name]                           # (Cin, Cout, k, k) PyTorch layout
        Cin, Cout, k, _ = w.shape
        _, H, W, _ = x.shape

        if bn_name is not None:
            # BatchNorm in eval mode: fold running stats + affine into scale/bias.
            # TODO(synk): training-mode BN (batch statistics) not reproduced here.
            gamma, beta, rmean, rvar = params[bn_name]
            scale = gamma / jnp.sqrt(rvar + 1e-5)
            bias = beta - rmean * scale
        else:
            scale = jnp.ones((Cout,), jnp.float32)
            bias = jnp.zeros((Cout,), jnp.float32)

        # Output-side ConvTranspose GEMM: fold BN scale into the weight columns.
        w_gemm = (w * scale[None, :, None, None]).reshape(Cin, Cout * k * k)
        x_flat = x.reshape(B * H * W, Cin)

        if H == 1 and W == 1:
            # Layer 1: no overlap-add -> fuse bias + activation in the kernel.
            bias_cols = jnp.broadcast_to(bias[:, None], (Cout, k * k))
            bias_cols = bias_cols.reshape(1, Cout * k * k)
            y_cols = fused_gemm(x_flat, w_gemm, bias_cols=bias_cols, act=act)
            x = _col2im(y_cols, B, H, W, Cout, k, stride, pad)
        else:
            y_cols = fused_gemm(x_flat, w_gemm, bias_cols=None, act="none")
            x = _col2im(y_cols, B, H, W, Cout, k, stride, pad)
            x = x + bias.reshape(1, 1, 1, Cout)
            if act == "relu":
                x = jnp.maximum(x, 0.0)
            elif act == "tanh":
                x = jnp.tanh(x)
    return x.transpose(0, 3, 1, 2)                   # NHWC -> NCHW once at the end


# ----------------------------------------------------------------------------
# Deterministic parameter init (DCGAN-style, scaled-down channel counts)
# ----------------------------------------------------------------------------
def init_params(key, nz, ngf, nc):
    ks = jax.random.split(key, 16)

    def conv_w(k, cin, cout):
        return 0.02 * jax.random.normal(k, (cin, cout, 4, 4), jnp.float32)

    def bn_p(k1, k2, c):
        gamma = 1.0 + 0.02 * jax.random.normal(k1, (c,), jnp.float32)
        beta = 0.02 * jax.random.normal(k2, (c,), jnp.float32)
        rmean = jnp.zeros((c,), jnp.float32)
        rvar = jnp.ones((c,), jnp.float32)
        return (gamma, beta, rmean, rvar)

    return {
        "w1": conv_w(ks[0], nz, ngf * 8),
        "bn1": bn_p(ks[1], ks[2], ngf * 8),
        "w2": conv_w(ks[3], ngf * 8, ngf * 4),
        "bn2": bn_p(ks[4], ks[5], ngf * 4),
        "w3": conv_w(ks[6], ngf * 4, ngf * 2),
        "bn3": bn_p(ks[7], ks[8], ngf * 2),
        "w4": conv_w(ks[9], ngf * 2, ngf),
        "bn4": bn_p(ks[10], ks[11], ngf),
        "w5": conv_w(ks[12], ngf, nc),
    }


if __name__ == "__main__":
    # Small config consistent with the module: z is (B, nz, 1, 1); the five
    # deconvs take the spatial path 1 -> 4 -> 8 -> 16 -> 32 -> 64.
    B, nz, ngf, nc = 2, 16, 8, 3

    key = jax.random.PRNGKey(0)
    k_params, k_z = jax.random.split(key)
    params = init_params(k_params, nz, ngf, nc)
    z = jax.random.normal(k_z, (B, nz, 1, 1), jnp.float32)

    out = jax.jit(netG_forward)(z, params)
    out = jax.block_until_ready(out)

    assert out.shape == (B, nc, 64, 64), out.shape
    assert bool(jnp.all(jnp.isfinite(out)))
    assert float(jnp.max(jnp.abs(out))) <= 1.0 + 1e-6  # tanh range
    print("KERNEL_OK")
</pallas_src>

<mosaic_0001>
module attributes {stable_mosaic.version = 11 : i64} {
  func.func @_gemm_kernel(%arg0: i32, %arg1: memref<2x16xbf16, #tpu.memory_space<vmem>>, %arg2: memref<16x1024xbf16, #tpu.memory_space<vmem>>, %arg3: memref<1x1024xf32, #tpu.memory_space<vmem>>, %arg4: memref<2x1024xf32, #tpu.memory_space<vmem>>) attributes {dimension_semantics = [#tpu.dimension_semantics<parallel>], iteration_bounds = array<i64: 1>, scalar_prefetch = 0 : i64, scratch_operands = 0 : i64, tpu.core_type = #tpu.core_type<tc>, window_params = [{transform_indices = @transform_0, window_bounds = array<i64: 2, 16>}, {pipeline_mode = #tpu.pipeline_mode<synchronous>, transform_indices = @transform_1, window_bounds = array<i64: 16, 1024>}, {pipeline_mode = #tpu.pipeline_mode<synchronous>, transform_indices = @transform_2, window_bounds = array<i64: 1, 1024>}, {transform_indices = @transform_3, window_bounds = array<i64: 2, 1024>}]} {
    %c0 = arith.constant 0 : index
    %c0_0 = arith.constant 0 : index
    %0 = vector.load %arg1[%c0, %c0_0] : memref<2x16xbf16, #tpu.memory_space<vmem>>, vector<2x16xbf16>
    %c0_1 = arith.constant 0 : index
    %c0_2 = arith.constant 0 : index
    %1 = vector.load %arg2[%c0_1, %c0_2] : memref<16x1024xbf16, #tpu.memory_space<vmem>>, vector<16x1024xbf16>
    %cst = arith.constant dense<0.000000e+00> : vector<2x1024xf32>
    %2 = tpu.matmul %0, %1, %cst {dimension_numbers = #tpu.dot_dimension_numbers<[1], [0], [0], [1], [0, 0, 1, 1], [], []>} : vector<2x16xbf16>, vector<16x1024xbf16>, vector<2x1024xf32> -> vector<2x1024xf32>
    %c0_3 = arith.constant 0 : index
    %c0_4 = arith.constant 0 : index
    %3 = vector.load %arg3[%c0_3, %c0_4] : memref<1x1024xf32, #tpu.memory_space<vmem>>, vector<1x1024xf32>
    %4 = vector.broadcast %3 : vector<1x1024xf32> to vector<2x1024xf32>
    %5 = arith.addf %2, %4 : vector<2x1024xf32>
    %cst_5 = arith.constant 0.000000e+00 : f32
    %6 = vector.broadcast %cst_5 : f32 to vector<2x1024xf32>
    %7 = arith.maximumf %5, %6 : vector<2x1024xf32>
    %c0_6 = arith.constant 0 : index
    %c0_7 = arith.constant 0 : index
    %8 = vector.load %arg4[%c0_6, %c0_7] : memref<2x1024xf32, #tpu.memory_space<vmem>>, vector<2x1024xf32>
    tpu.vector_store %arg4[%c0_6, %c0_7], %7 {strides = array<i32>} : memref<2x1024xf32, #tpu.memory_space<vmem>>, vector<2x1024xf32>,
    return
  }
  func.func @transform_0(%arg0: i32) -> (i32, i32) {
    %c0_i32 = arith.constant 0 : i32
    %c0_i32_0 = arith.constant 0 : i32
    return %arg0, %c0_i32 : i32, i32
  }
  func.func @transform_1(%arg0: i32) -> (i32, i32) {
    %c0_i32 = arith.constant 0 : i32
    %c0_i32_0 = arith.constant 0 : i32
    %c0_i32_1 = arith.constant 0 : i32
    return %c0_i32, %c0_i32_0 : i32, i32
  }
  func.func @transform_2(%arg0: i32) -> (i32, i32) {
    %c0_i32 = arith.constant 0 : i32
    %c0_i32_0 = arith.constant 0 : i32
    %c0_i32_1 = arith.constant 0 : i32
    return %c0_i32, %c0_i32_0 : i32, i32
  }
  func.func @transform_3(%arg0: i32) -> (i32, i32) {
    %c0_i32 = arith.constant 0 : i32
    %c0_i32_0 = arith.constant 0 : i32
    return %arg0, %c0_i32 : i32, i32
  }
}

module attributes {stable_mosaic.version = 11 : i64} {
  func.func @_gemm_kernel(%arg0: i32, %arg1: memref<16x64xbf16, #tpu.memory_space<vmem>>, %arg2: memref<64x512xbf16, #tpu.memory_space<vmem>>, %arg3: memref<16x512xf32, #tpu.memory_space<vmem>>) attributes {dimension_semantics = [#tpu.dimension_semantics<parallel>], iteration_bounds = array<i64: 2>, scalar_prefetch = 0 : i64, scratch_operands = 0 : i64, tpu.core_type = #tpu.core_type<tc>, window_params = [{transform_indices = @transform_0, window_bounds = array<i64: 16, 64>}, {pipeline_mode = #tpu.pipeline_mode<synchronous>, transform_indices = @transform_1, window_bounds = array<i64: 64, 512>}, {transform_indices = @transform_2, window_bounds = array<i64: 16, 512>}]} {
    %c0 = arith.constant 0 : index
    %c0_0 = arith.constant 0 : index
    %0 = vector.load %arg1[%c0, %c0_0] : memref<16x64xbf16, #tpu.memory_space<vmem>>, vector<16x64xbf16>
    %c0_1 = arith.constant 0 : index
    %c0_2 = arith.constant 0 : index
    %1 = vector.load %arg2[%c0_1, %c0_2] : memref<64x512xbf16, #tpu.memory_space<vmem>>, vector<64x512xbf16>
    %cst = arith.constant dense<0.000000e+00> : vector<16x512xf32>
    %2 = tpu.matmul %0, %1, %cst {dimension_numbers = #tpu.dot_dimension_numbers<[1], [0], [0], [1], [0, 0, 1, 1], [], []>} : vector<16x64xbf16>, vector<64x512xbf16>, vector<16x512xf32> -> vector<16x512xf32>
    %c0_3 = arith.constant 0 : index
    %c0_4 = arith.constant 0 : index
    %3 = vector.load %arg3[%c0_3, %c0_4] : memref<16x512xf32, #tpu.memory_space<vmem>>, vector<16x512xf32>
    tpu.vector_store %arg3[%c0_3, %c0_4], %2 {strides = array<i32>} : memref<16x512xf32, #tpu.memory_space<vmem>>, vector<16x512xf32>,
    return
  }
  func.func @transform_0(%arg0: i32) -> (i32, i32) {
    %c0_i32 = arith.constant 0 : i32
    %c0_i32_0 = arith.constant 0 : i32
    return %arg0, %c0_i32 : i32, i32
  }
  func.func @transform_1(%arg0: i32) -> (i32, i32) {
    %c0_i32 = arith.constant 0 : i32
    %c0_i32_0 = arith.constant 0 : i32
    %c0_i32_1 = arith.constant 0 : i32
    return %c0_i32, %c0_i32_0 : i32, i32
  }
  func.func @transform_2(%arg0: i32) -> (i32, i32) {
    %c0_i32 = arith.constant 0 : i32
    %c0_i32_0 = arith.constant 0 : i32
    return %arg0, %c0_i32 : i32, i32
  }
}

module attributes {stable_mosaic.version = 11 : i64} {
  func.func @_gemm_kernel(%arg0: i32, %arg1: memref<64x32xbf16, #tpu.memory_space<vmem>>, %arg2: memref<32x256xbf16, #tpu.memory_space<vmem>>, %arg3: memref<64x256xf32, #tpu.memory_space<vmem>>) attributes {dimension_semantics = [#tpu.dimension_semantics<parallel>], iteration_bounds = array<i64: 2>, scalar_prefetch = 0 : i64, scratch_operands = 0 : i64, tpu.core_type = #tpu.core_type<tc>, window_params = [{transform_indices = @transform_0, window_bounds = array<i64: 64, 32>}, {pipeline_mode = #tpu.pipeline_mode<synchronous>, transform_indices = @transform_1, window_bounds = array<i64: 32, 256>}, {transform_indices = @transform_2, window_bounds = array<i64: 64, 256>}]} {
    %c0 = arith.constant 0 : index
    %c0_0 = arith.constant 0 : index
    %0 = vector.load %arg1[%c0, %c0_0] : memref<64x32xbf16, #tpu.memory_space<vmem>>, vector<64x32xbf16>
    %c0_1 = arith.constant 0 : index
    %c0_2 = arith.constant 0 : index
    %1 = vector.load %arg2[%c0_1, %c0_2] : memref<32x256xbf16, #tpu.memory_space<vmem>>, vector<32x256xbf16>
    %cst = arith.constant dense<0.000000e+00> : vector<64x256xf32>
    %2 = tpu.matmul %0, %1, %cst {dimension_numbers = #tpu.dot_dimension_numbers<[1], [0], [0], [1], [0, 0, 1, 1], [], []>} : vector<64x32xbf16>, vector<32x256xbf16>, vector<64x256xf32> -> vector<64x256xf32>
    %c0_3 = arith.constant 0 : index
    %c0_4 = arith.constant 0 : index
    %3 = vector.load %arg3[%c0_3, %c0_4] : memref<64x256xf32, #tpu.memory_space<vmem>>, vector<64x256xf32>
    tpu.vector_store %arg3[%c0_3, %c0_4], %2 {strides = array<i32>} : memref<64x256xf32, #tpu.memory_space<vmem>>, vector<64x256xf32>,
    return
  }
  func.func @transform_0(%arg0: i32) -> (i32, i32) {
    %c0_i32 = arith.constant 0 : i32
    %c0_i32_0 = arith.constant 0 : i32
    return %arg0, %c0_i32 : i32, i32
  }
  func.func @transform_1(%arg0: i32) -> (i32, i32) {
    %c0_i32 = arith.constant 0 : i32
    %c0_i32_0 = arith.constant 0 : i32
    %c0_i32_1 = arith.constant 0 : i32
    return %c0_i32, %c0_i32_0 : i32, i32
  }
  func.func @transform_2(%arg0: i32) -> (i32, i32) {
    %c0_i32 = arith.constant 0 : i32
    %c0_i32_0 = arith.constant 0 : i32
    return %arg0, %c0_i32 : i32, i32
  }
}

module attributes {stable_mosaic.version = 11 : i64} {
  func.func @_gemm_kernel(%arg0: i32, %arg1: memref<256x16xbf16, #tpu.memory_space<vmem>>, %arg2: memref<16x128xbf16, #tpu.memory_space<vmem>>, %arg3: memref<256x128xf32, #tpu.memory_space<vmem>>) attributes {dimension_semantics = [#tpu.dimension_semantics<parallel>], iteration_bounds = array<i64: 2>, scalar_prefetch = 0 : i64, scratch_operands = 0 : i64, tpu.core_type = #tpu.core_type<tc>, window_params = [{transform_indices = @transform_0, window_bounds = array<i64: 256, 16>}, {pipeline_mode = #tpu.pipeline_mode<synchronous>, transform_indices = @transform_1, window_bounds = array<i64: 16, 128>}, {transform_indices = @transform_2, window_bounds = array<i64: 256, 128>}]} {
    %c0 = arith.constant 0 : index
    %c0_0 = arith.constant 0 : index
    %0 = vector.load %arg1[%c0, %c0_0] : memref<256x16xbf16, #tpu.memory_space<vmem>>, vector<256x16xbf16>
    %c0_1 = arith.constant 0 : index
    %c0_2 = arith.constant 0 : index
    %1 = vector.load %arg2[%c0_1, %c0_2] : memref<16x128xbf16, #tpu.memory_space<vmem>>, vector<16x128xbf16>
    %cst = arith.constant dense<0.000000e+00> : vector<256x128xf32>
    %2 = tpu.matmul %0, %1, %cst {dimension_numbers = #tpu.dot_dimension_numbers<[1], [0], [0], [1], [0, 0, 1, 1], [], []>} : vector<256x16xbf16>, vector<16x128xbf16>, vector<256x128xf32> -> vector<256x128xf32>
    %c0_3 = arith.constant 0 : index
    %c0_4 = arith.constant 0 : index
    %3 = vector.load %arg3[%c0_3, %c0_4] : memref<256x128xf32, #tpu.memory_space<vmem>>, vector<256x128xf32>
    tpu.vector_store %arg3[%c0_3, %c0_4], %2 {strides = array<i32>} : memref<256x128xf32, #tpu.memory_space<vmem>>, vector<256x128xf32>,
    return
  }
  func.func @transform_0(%arg0: i32) -> (i32, i32) {
    %c0_i32 = arith.constant 0 : i32
    %c0_i32_0 = arith.constant 0 : i32
    return %arg0, %c0_i32 : i32, i32
  }
  func.func @transform_1(%arg0: i32) -> (i32, i32) {
    %c0_i32 = arith.constant 0 : i32
    %c0_i32_0 = arith.constant 0 : i32
    %c0_i32_1 = arith.constant 0 : i32
    return %c0_i32, %c0_i32_0 : i32, i32
  }
  func.func @transform_2(%arg0: i32) -> (i32, i32) {
    %c0_i32 = arith.constant 0 : i32
    %c0_i32_0 = arith.constant 0 : i32
    return %arg0, %c0_i32 : i32, i32
  }
}

module attributes {stable_mosaic.version = 11 : i64} {
  func.func @_gemm_kernel(%arg0: i32, %arg1: memref<1024x8xbf16, #tpu.memory_space<vmem>>, %arg2: memref<8x128xbf16, #tpu.memory_space<vmem>>, %arg3: memref<1024x128xf32, #tpu.memory_space<vmem>>) attributes {dimension_semantics = [#tpu.dimension_semantics<parallel>], iteration_bounds = array<i64: 2>, scalar_prefetch = 0 : i64, scratch_operands = 0 : i64, tpu.core_type = #tpu.core_type<tc>, window_params = [{transform_indices = @transform_0, window_bounds = array<i64: 1024, 8>}, {pipeline_mode = #tpu.pipeline_mode<synchronous>, transform_indices = @transform_1, window_bounds = array<i64: 8, 128>}, {transform_indices = @transform_2, window_bounds = array<i64: 1024, 128>}]} {
    %c0 = arith.constant 0 : index
    %c0_0 = arith.constant 0 : index
    %0 = vector.load %arg1[%c0, %c0_0] : memref<1024x8xbf16, #tpu.memory_space<vmem>>, vector<1024x8xbf16>
    %c0_1 = arith.constant 0 : index
    %c0_2 = arith.constant 0 : index
    %1 = vector.load %arg2[%c0_1, %c0_2] : memref<8x128xbf16, #tpu.memory_space<vmem>>, vector<8x128xbf16>
    %cst = arith.constant dense<0.000000e+00> : vector<1024x128xf32>
    %2 = tpu.matmul %0, %1, %cst {dimension_numbers = #tpu.dot_dimension_numbers<[1], [0], [0], [1], [0, 0, 1, 1], [], []>} : vector<1024x8xbf16>, vector<8x128xbf16>, vector<1024x128xf32> -> vector<1024x128xf32>
    %c0_3 = arith.constant 0 : index
    %c0_4 = arith.constant 0 : index
    %3 = vector.load %arg3[%c0_3, %c0_4] : memref<1024x128xf32, #tpu.memory_space<vmem>>, vector<1024x128xf32>
    tpu.vector_store %arg3[%c0_3, %c0_4], %2 {strides = array<i32>} : memref<1024x128xf32, #tpu.memory_space<vmem>>, vector<1024x128xf32>,
    return
  }
  func.func @transform_0(%arg0: i32) -> (i32, i32) {
    %c0_i32 = arith.constant 0 : i32
    %c0_i32_0 = arith.constant 0 : i32
    return %arg0, %c0_i32 : i32, i32
  }
  func.func @transform_1(%arg0: i32) -> (i32, i32) {
    %c0_i32 = arith.constant 0 : i32
    %c0_i32_0 = arith.constant 0 : i32
    %c0_i32_1 = arith.constant 0 : i32
    return %c0_i32, %c0_i32_0 : i32, i32
  }
  func.func @transform_2(%arg0: i32) -> (i32, i32) {
    %c0_i32 = arith.constant 0 : i32
    %c0_i32_0 = arith.constant 0 : i32
    return %arg0, %c0_i32 : i32, i32
  }
}

</mosaic_0001>

<llo_original>
// kernel: netG_forward.5
$region0: #{netG_forward.5}
  #allocation0 [shape = 'u32[]', space=smem, size = 0x4, offset = 0x4, fixed_abs, tag = 'smem constant byte address 0x4 - core index']
  #allocation1 [shape = 'u32[72,128]{1,0:T(1,128)}', space=vmem, size = 0x9000, scoped, tag = 'internal scratch']
  %s0 = inlined_call_operand.vmem [shape: bf16[2,16], index: 0, kind: input, shape index: {}]
  %s1 = inlined_call_operand.vmem [shape: bf16[16,1024], index: 1, kind: input, shape index: {}]
  %s2 = inlined_call_operand.vmem [shape: f32[1,1024], index: 2, kind: input, shape index: {}]
  %s3 = inlined_call_operand.vmem [shape: f32[2,1024], index: 3, kind: output, shape index: {}]
  %s4 = sld [smem:[#allocation0]]
  $region22: #{netG_forward.5} parent=0
    _
  %s6 = ssub.s32 1, %s4
  %s7 = scalar_select 0, %s6, %s4
  // Predicated region
  $region2: #{netG_forward.5} parent=0 // pred_check
    _
  $region3: #{netG_forward.5} parent=0 // pred_check_branch
    %9 = sbr.rel (0) target = $region5
  $region4: #{netG_forward.5} parent=0 // pred_region
    _
  $region5: #{netG_forward.5} parent=0 // pred_fallthru
    _
  // Predicated region
  $region6: #{netG_forward.5} parent=0 // pred_check
    _
  $region7: #{netG_forward.5} parent=0 // pred_check_branch
    %11 = sbr.rel (0) target = $region9
  $region8: #{netG_forward.5} parent=0 // pred_region
    _
  $region9: #{netG_forward.5} parent=0 // pred_fallthru
    _
  // Predicated region
  $region10: #{netG_forward.5} parent=0 // pred_check
    _
  $region11: #{netG_forward.5} parent=0 // pred_check_branch
    %13 = sbr.rel (0) target = $region13
  $region12: #{netG_forward.5} parent=0 // pred_region
    _
  $region13: #{netG_forward.5} parent=0 // pred_fallthru
    _
  %v15 = vld [vmem:[%s0] sm:$0x1]
  %v16 = vld [vmem:[%s1] sm:$0xff]
  %v17 = vld [vmem:[%s1 + $0x8] sm:$0xff]
  %v18 = vld [vmem:[%s1 + $0x10] sm:$0xff]
  %v19 = vld [vmem:[%s1 + $0x18] sm:$0xff]
  %v20 = vld [vmem:[%s1 + $0x20] sm:$0xff]
  %v21 = vld [vmem:[%s1 + $0x28] sm:$0xff]
  %v22 = vld [vmem:[%s1 + $0x30] sm:$0xff]
  %v23 = vld [vmem:[%s1 + $0x38] sm:$0xff]
  %v24 = vld [vmem:[%s2] sm:$0xff]
  %v26 = vperm.slane %v24, 0
  %v27 = vperm.slane %v24, 1
  %v28 = vperm.slane %v24, 2
  %v29 = vperm.slane %v24, 3
  %v30 = vperm.slane %v24, 4
  %v31 = vperm.slane %v24, 5
  %v32 = vperm.slane %v24, 6
  %v33 = vperm.slane %v24, 7
  %v50 = vunpack.c.l.b16 %v16
  %v51 = vunpack.c.h.b16 %v16
  %v52 = vunpack.c.l.b16 %v17
  %v53 = vunpack.c.h.b16 %v17
  %v54 = vunpack.c.l.b16 %v18
  %v55 = vunpack.c.h.b16 %v18
  %v56 = vunpack.c.l.b16 %v19
  %v57 = vunpack.c.h.b16 %v19
  %v58 = vunpack.c.l.b16 %v20
  %v59 = vunpack.c.h.b16 %v20
  %v60 = vunpack.c.l.b16 %v21
  %v61 = vunpack.c.h.b16 %v21
  %v62 = vunpack.c.l.b16 %v22
  %v63 = vunpack.c.h.b16 %v22
  %v64 = vunpack.c.l.b16 %v23
  %v65 = vunpack.c.h.b16 %v23
  %v66 = vpack.c.b16 %v58, %v50
  %v67 = vpack.c.b16 %v59, %v51
  %v68 = vpack.c.b16 %v60, %v52
  %v69 = vpack.c.b16 %v61, %v53
  %v70 = vpack.c.b16 %v62, %v54
  %v71 = vpack.c.b16 %v63, %v55
  %v72 = vpack.c.b16 %v64, %v56
  %v73 = vpack.c.b16 %v65, %v57
  %vm82 = vcmask 130048
  %v84 = vsel %vm82, %v15, 0
  %86 = vmatpush.bf16.msra.mxu0 0
  %87 = vmatpush.bf16.msra.mxu0 0
  %88 = vmatpush.bf16.msra.mxu0 0
  %89 = vmatpush.bf16.msra.mxu0 0
  %90 = vmatpush.bf16.msra.mxu0 0
  %91 = vmatpush.bf16.msra.mxu0 0
  %92 = vmatpush.bf16.msra.mxu0 0
  %93 = vmatpush.bf16.msra.mxu0 %v66
  %94 = vmatmul.bf16.gmra.mxu0 %v84
  %v95 = vpop.f32.mrf.mxu0
  %v96 = vadd.f32 %v26, %v95
  %v97 = vpop.f32.mrf.mxu0
  %98 = vdwg.mxu0
  %99 = vmatpush.bf16.msra.mxu0 0
  %100 = vmatpush.bf16.msra.mxu0 0
  %101 = vmatpush.bf16.msra.mxu0 0
  %102 = vmatpush.bf16.msra.mxu0 0
  %103 = vmatpush.bf16.msra.mxu0 0
  %104 = vmatpush.bf16.msra.mxu0 0
  %105 = vmatpush.bf16.msra.mxu0 0
  %106 = vmatpush.bf16.msra.mxu0 %v67
  %107 = vmatmul.bf16.gmra.mxu0 %v84
  %v108 = vpop.f32.mrf.mxu0
  %v109 = vadd.f32 %v27, %v108
  %v110 = vpop.f32.mrf.mxu0
  %111 = vdwg.mxu0
  %112 = vmatpush.bf16.msra.mxu0 0
  %113 = vmatpush.bf16.msra.mxu0 0
  %114 = vmatpush.bf16.msra.mxu0 0
  %115 = vmatpush.bf16.msra.mxu0 0
  %116 = vmatpush.bf16.msra.mxu0 0
  %117 = vmatpush.bf16.msra.mxu0 0
  %118 = vmatpush.bf16.msra.mxu0 0
  %119 = vmatpush.bf16.msra.mxu0 %v68
  %120 = vmatmul.bf16.gmra.mxu0 %v84
  %v121 = vpop.f32.mrf.mxu0
  %v122 = vadd.f32 %v28, %v121
  %v123 = vpop.f32.mrf.mxu0
  %124 = vdwg.mxu0
  %125 = vmatpush.bf16.msra.mxu0 0
  %126 = vmatpush.bf16.msra.mxu0 0
  %127 = vmatpush.bf16.msra.mxu0 0
  %128 = vmatpush.bf16.msra.mxu0 0
  %129 = vmatpush.bf16.msra.mxu0 0
  %130 = vmatpush.bf16.msra.mxu0 0
  %131 = vmatpush.bf16.msra.mxu0 0
  %132 = vmatpush.bf16.msra.mxu0 %v69
  %133 = vmatmul.bf16.gmra.mxu0 %v84
  %v134 = vpop.f32.mrf.mxu0
  %v135 = vadd.f32 %v29, %v134
  %v136 = vpop.f32.mrf.mxu0
  %137 = vdwg.mxu0
  %138 = vmatpush.bf16.msra.mxu0 0
  %139 = vmatpush.bf16.msra.mxu0 0
  %140 = vmatpush.bf16.msra.mxu0 0
  %141 = vmatpush.bf16.msra.mxu0 0
  %142 = vmatpush.bf16.msra.mxu0 0
  %143 = vmatpush.bf16.msra.mxu0 0
  %144 = vmatpush.bf16.msra.mxu0 0
  %145 = vmatpush.bf16.msra.mxu0 %v70
  %146 = vmatmul.bf16.gmra.mxu0 %v84
  %v147 = vpop.f32.mrf.mxu0
  %v148 = vadd.f32 %v30, %v147
  %v149 = vpop.f32.mrf.mxu0
  %150 = vdwg.mxu0
  %151 = vmatpush.bf16.msra.mxu0 0
  %152 = vmatpush.bf16.msra.mxu0 0
  %153 = vmatpush.bf16.msra.mxu0 0
  %154 = vmatpush.bf16.msra.mxu0 0
  %155 = vmatpush.bf16.msra.mxu0 0
  %156 = vmatpush.bf16.msra.mxu0 0
  %157 = vmatpush.bf16.msra.mxu0 0
  %158 = vmatpush.bf16.msra.mxu0 %v71
  %159 = vmatmul.bf16.gmra.mxu0 %v84
  %v160 = vpop.f32.mrf.mxu0
  %v161 = vadd.f32 %v31, %v160
  %v162 = vpop.f32.mrf.mxu0
  %163 = vdwg.mxu0
  %164 = vmatpush.bf16.msra.mxu0 0
  %165 = vmatpush.bf16.msra.mxu0 0
  %166 = vmatpush.bf16.msra.mxu0 0
  %167 = vmatpush.bf16.msra.mxu0 0
  %168 = vmatpush.bf16.msra.mxu0 0
  %169 = vmatpush.bf16.msra.mxu0 0
  %170 = vmatpush.bf16.msra.mxu0 0
  %171 = vmatpush.bf16.msra.mxu0 %v72
  %172 = vmatmul.bf16.gmra.mxu0 %v84
  %v173 = vpop.f32.mrf.mxu0
  %v174 = vadd.f32 %v32, %v173
  %v175 = vpop.f32.mrf.mxu0
  %176 = vdwg.mxu0
  %177 = vmatpush.bf16.msra.mxu0 0
  %178 = vmatpush.bf16.msra.mxu0 0
  %179 = vmatpush.bf16.msra.mxu0 0
  %180 = vmatpush.bf16.msra.mxu0 0
  %181 = vmatpush.bf16.msra.mxu0 0
  %182 = vmatpush.bf16.msra.mxu0 0
  %183 = vmatpush.bf16.msra.mxu0 0
  %184 = vmatpush.bf16.msra.mxu0 %v73
  %185 = vmatmul.bf16.gmra.mxu0 %v84
  %v186 = vpop.f32.mrf.mxu0
  %v187 = vadd.f32 %v33, %v186
  %v188 = vpop.f32.mrf.mxu0
  %189 = vdwg.mxu0
  %v190 = vmax.f32 %v96, 0.0
  %v191 = vmax.f32 %v109, 0.0
  %v192 = vmax.f32 %v122, 0.0
  %v193 = vmax.f32 %v135, 0.0
  %v194 = vmax.f32 %v148, 0.0
  %v195 = vmax.f32 %v161, 0.0
  %v196 = vmax.f32 %v174, 0.0
  %v197 = vmax.f32 %v187, 0.0
  %v206 = vrot.slane %v191, 6
  %v207 = vrot.slane %v192, 4
  %v208 = vrot.slane %v193, 2
  %v209 = vrot.slane %v195, 6
  %v210 = vrot.slane %v196, 4
  %v211 = vrot.slane %v197, 2
  %vm212 = vcmask 1041408
  %v213 = vsel %vm212, %v190, %v206
  %vm214 = vcmask 1045508
  %v215 = vsel %vm214, %v207, %v208
  %vm216 = vcmask 1043456
  %v217 = vsel %vm216, %v213, %v215
  %v218 = vsel %vm212, %v194, %v209
  %v219 = vsel %vm214, %v210, %v211
  %v220 = vsel %vm216, %v218, %v219
  %223 = vst [vmem:[%s3] sm:$0xff] %v217
  %224 = vst [vmem:[%s3 + $0x8] sm:$0xff] %v220
  // Predicated region
  $region14: #{netG_forward.5} parent=0 // pred_check
    _
  $region15: #{netG_forward.5} parent=0 // pred_check_branch
    %226 = sbr.rel (0) target = $region17
  $region16: #{netG_forward.5} parent=0 // pred_region
    _
  $region17: #{netG_forward.5} parent=0 // pred_fallthru
    _
  // Predicated region
  $region18: #{netG_forward.5} parent=0 // pred_check
    _
  $region19: #{netG_forward.5} parent=0 // pred_check_branch
    %228 = sbr.rel (0) target = $region21
  $region20: #{netG_forward.5} parent=0 // pred_region
    _
  $region21: #{netG_forward.5} parent=0 // pred_fallthru
    _

// kernel: netG_forward.6
$region0: #{netG_forward.6}
  #allocation0 [shape = 'u32[]', space=smem, size = 0x4, offset = 0x4, fixed_abs, tag = 'smem constant byte address 0x4 - core index']
  #allocation1 [shape = 'u32[72,128]{1,0:T(1,128)}', space=vmem, size = 0x9000, scoped, tag = 'internal scratch']
  %s0 = inlined_call_operand.vmem [shape: bf16[32,64], index: 0, kind: input, shape index: {}]
  %s1 = inlined_call_operand.vmem [shape: bf16[64,512], index: 1, kind: input, shape index: {}]
  %s2 = inlined_call_operand.vmem [shape: f32[32,512], index: 2, kind: output, shape index: {}]
  %s3 = sld [smem:[#allocation0]]
  $region41: #{netG_forward.6} parent=0
    _
  %s5 = ssub.s32 1, %s3
  %s6 = scalar_select 0, %s5, %s3
  loop: start=0, step=1, limit=4
  $region2: #{netG_forward.6} parent=0 // loop_pre_header
    _
  $region3: #{netG_forward.6} parent=0 // loop_header
    %s8 = sphi 0, %s12
    %p9 = scmp.ge.s32.totalorder %s8, 4
    %s18 = sphi 0, %s20
    %s21 = sphi 0, %s18
    %s22 = sphi 0, %s21
    %s38 = sphi 0, %s22
    %s42 = sphi 0, %s42
    %s44 = sphi 0, %s42
    %s45 = sphi 0, %s44
    %s59 = sphi 0, %s45
    %s65 = sphi 0, %s67
    %s68 = sphi 0, %s65
    %s69 = sphi 0, %s68
    %s85 = sphi 0, %s69
  $region4: #{netG_forward.6} parent=0 // loop_header_branch
    %11 = sbr.rel (%p9) target = $region8
  $region5: #{netG_forward.6} parent=0 // loop_body
    %s13 = ssub.s32 %s8, 1
    %s14 = ssub.s32 %s8, 2
    %s15 = sadd.s32 %s8, 1
    %s16 = ssub.s32 %s8, %s15
    %p17 = scmp.eq.s32.totalorder %s16, 0
    %s19 = sadd.s32 %s18, 1
    %s20 = scalar_select %p17, %s18, %s19
    %p23 = pneg %p17
    %p24 = scmp.eq.s32.totalorder %s8, 1
    %p25 = por %p23, %p24
    %p26 = scmp.ne.s32.totalorder %s18, %s21
    %p27 = scmp.eq.s32.totalorder %s8, 0
    %p28 = por %p26, %p27
    %p29 = scmp.ne.s32.totalorder %s18, %s21
    %p30 = scmp.eq.s32.totalorder %s13, 1
    %p31 = por %p29, %p30
    %p32 = scmp.ne.s32.totalorder %s21, %s22
    %p33 = scmp.eq.s32.totalorder %s13, 0
    %p34 = por %p32, %p33
    %p35 = scmp.ne.s32.totalorder %s21, %s22
    %p36 = scmp.eq.s32.totalorder %s14, 1
    %p37 = por %p35, %p36
    %p39 = scmp.ne.s32.totalorder %s22, %s38
    %p40 = scmp.eq.s32.totalorder %s14, 0
    %p41 = por %p39, %p40
    %s43 = sadd.s32 %s42, 1
    %p46 = scmp.eq.s32.totalorder %s8, 1
    %p47 = scmp.ne.s32.totalorder %s42, %s44
    %p48 = scmp.eq.s32.totalorder %s8, 0
    %p49 = por %p47, %p48
    %p50 = scmp.ne.s32.totalorder %s42, %s44
    %p51 = scmp.eq.s32.totalorder %s13, 1
    %p52 = por %p50, %p51
    %p53 = scmp.ne.s32.totalorder %s44, %s45
    %p54 = scmp.eq.s32.totalorder %s13, 0
    %p55 = por %p53, %p54
    %p56 = scmp.ne.s32.totalorder %s44, %s45
    %p57 = scmp.eq.s32.totalorder %s14, 1
    %p58 = por %p56, %p57
    %p60 = scmp.ne.s32.totalorder %s45, %s59
    %p61 = scmp.eq.s32.totalorder %s14, 0
    %p62 = por %p60, %p61
    %s63 = ssub.s32 %s8, %s15
    %p64 = scmp.eq.s32.totalorder %s63, 0
    %s66 = sadd.s32 %s65, 1
    %s67 = scalar_select %p64, %s65, %s66
    %p70 = pneg %p64
    %p71 = scmp.eq.s32.totalorder %s8, 1
    %p72 = por %p70, %p71
    %p73 = scmp.ne.s32.totalorder %s65, %s68
    %p74 = scmp.eq.s32.totalorder %s8, 0
    %p75 = por %p73, %p74
    %p76 = scmp.ne.s32.totalorder %s65, %s68
    %p77 = scmp.eq.s32.totalorder %s13, 1
    %p78 = por %p76, %p77
    %p79 = scmp.ne.s32.totalorder %s68, %s69
    %p80 = scmp.eq.s32.totalorder %s13, 0
    %p81 = por %p79, %p80
    %p82 = scmp.ne.s32.totalorder %s68, %s69
    %p83 = scmp.eq.s32.totalorder %s14, 1
    %p84 = por %p82, %p83
    %p86 = scmp.ne.s32.totalorder %s69, %s85
    %p87 = scmp.eq.s32.totalorder %s14, 0
    %p88 = por %p86, %p87
    %p89 = scmp.le.s32.totalorder 1, %s8
    %p90 = scmp.lt.s32.totalorder %s8, 3
    %p91 = pnand %p89, %p90
    %p92 = pneg %p91
    // Predicated region
    $region9: #{netG_forward.6} parent=5 // pred_check
      _
    $region10: #{netG_forward.6} parent=5 // pred_check_branch
      %94 = sbr.rel (%p91) target = $region12
    $region11: #{netG_forward.6} parent=5 // pred_region
      %s95 = ssub.s32 %s8, 1
      // Predicated region
      $region13: #{netG_forward.6} parent=11 // pred_check
        %p96 = pneg %p55
      $region14: #{netG_forward.6} parent=11 // pred_check_branch
        %98 = sbr.rel (%p96) target = $region16
      $region15: #{netG_forward.6} parent=11 // pred_region
        _
      $region16: #{netG_forward.6} parent=11 // pred_fallthru
        _
    $region12: #{netG_forward.6} parent=5 // pred_fallthru
      _
    %p99 = scmp.lt.s32.totalorder %s8, 2
    // Predicated region
    $region17: #{netG_forward.6} parent=5 // pred_check
      %p100 = pneg %p99
    $region18: #{netG_forward.6} parent=5 // pred_check_branch
      %102 = sbr.rel (%p100) target = $region20
    $region19: #{netG_forward.6} parent=5 // pred_region
      // Predicated region
      $region21: #{netG_forward.6} parent=19 // pred_check
        %p103 = pneg %p28
      $region22: #{netG_forward.6} parent=19 // pred_check_branch
        %105 = sbr.rel (%p103) target = $region24
      $region23: #{netG_forward.6} parent=19 // pred_region
        %s106 = smul.u32 2, %s8
        %p107 = scmp.lt.s32.totalorder %s106, 3
        %s108 = scalar_select %p107, %s106, 3
        %s109 = smul.addr %s108, 4
        %s110 = scalar_lea.vmem %s0, %s109
        %s111 = smul.u32 2, %s8
      $region24: #{netG_forward.6} parent=19 // pred_fallthru
        _
    $region20: #{netG_forward.6} parent=5 // pred_fallthru
      _
    %p112 = scmp.le.s32.totalorder 1, %s8
    %p113 = scmp.lt.s32.totalorder %s8, 3
    %p114 = pnand %p112, %p113
    %p115 = pneg %p114
    // Predicated region
    $region25: #{netG_forward.6} parent=5 // pred_check
      _
    $region26: #{netG_forward.6} parent=5 // pred_check_branch
      %117 = sbr.rel (%p114) target = $region28
    $region27: #{netG_forward.6} parent=5 // pred_region
      %s118 = ssub.s32 %s8, 1
      %s119 = smul.u32 2, %s13
      %p120 = scmp.lt.s32.totalorder %s119, 3
      %s121 = scalar_select %p120, %s119, 3
      %s122 = smul.addr %s121, 4
      %s123 = scalar_lea.vmem %s0, %s122
      %p124 = pneg %p34
      %p125 = pneg %p31
      %p126 = pneg %p55
      %p127 = pneg %p52
      %p128 = pneg %p81
      %p129 = pneg %p78
      %s130 = smul.u32 2, %s13
      %p131 = scmp.lt.s32.totalorder %s130, 3
      %s132 = scalar_select %p131, %s130, 3
      %s133 = smul.addr %s132, 4
      %s134 = smul.addr %s133, 8
      %s135 = scalar_lea.vmem %s2, %s134
      %s136 = smul.u32 2, %s13
      %p137 = scmp.lt.s32.totalorder %s136, 3
      %s138 = scalar_select %p137, %s136, 3
      %s139 = smul.addr %s138, 4
      %s140 = scalar_lea.vmem %s0, %s139
      %s141 = smul.u32 2, %s13
      %s142 = smul.u32 2, %s13
      %p143 = scmp.lt.s32.totalorder %s142, 3
      %s144 = scalar_select %p143, %s142, 3
      %s145 = smul.addr %s144, 4
      %s146 = smul.addr %s145, 8
      %s147 = scalar_lea.vmem %s2, %s146
      %s148 = smul.u32 2, %s13
      %v150 = vld [vmem:[%s140] sm:$0xf]
      %v151 = vld [vmem:[%s140 + $0x4] sm:$0xf]
      %v152 = vld [vmem:[%s1] sm:$0xff]
      %v153 = vld [vmem:[%s1 + $0x8] sm:$0xff]
      %v154 = vld [vmem:[%s1 + $0x10] sm:$0xff]
      %v155 = vld [vmem:[%s1 + $0x18] sm:$0xff]
      %v156 = vld [vmem:[%s1 + $0x20] sm:$0xff]
      %v157 = vld [vmem:[%s1 + $0x28] sm:$0xff]
      %v158 = vld [vmem:[%s1 + $0x30] sm:$0xff]
      %v159 = vld [vmem:[%s1 + $0x38] sm:$0xff]
      %v160 = vld [vmem:[%s1 + $0x40] sm:$0xff]
      %v161 = vld [vmem:[%s1 + $0x48] sm:$0xff]
      %v162 = vld [vmem:[%s1 + $0x50] sm:$0xff]
      %v163 = vld [vmem:[%s1 + $0x58] sm:$0xff]
      %v164 = vld [vmem:[%s1 + $0x60] sm:$0xff]
      %v165 = vld [vmem:[%s1 + $0x68] sm:$0xff]
      %v166 = vld [vmem:[%s1 + $0x70] sm:$0xff]
      %v167 = vld [vmem:[%s1 + $0x78] sm:$0xff]
      %v170 = vunpack.c.l.b16 %v150
      %v171 = vunpack.c.l.b16 %v151
      %v172 = vpack.c.b16 %v171, %v170
      %v189 = vunpack.c.l.b16 %v152
      %v190 = vunpack.c.h.b16 %v152
      %v191 = vunpack.c.l.b16 %v153
      %v192 = vunpack.c.h.b16 %v153
      %v193 = vunpack.c.l.b16 %v154
      %v194 = vunpack.c.h.b16 %v154
      %v195 = vunpack.c.l.b16 %v155
      %v196 = vunpack.c.h.b16 %v155
      %v197 = vunpack.c.l.b16 %v156
      %v198 = vunpack.c.h.b16 %v156
      %v199 = vunpack.c.l.b16 %v157
      %v200 = vunpack.c.h.b16 %v157
      %v201 = vunpack.c.l.b16 %v158
      %v202 = vunpack.c.h.b16 %v158
      %v203 = vunpack.c.l.b16 %v159
      %v204 = vunpack.c.h.b16 %v159
      %v205 = vunpack.c.l.b16 %v160
      %v206 = vunpack.c.h.b16 %v160
      %v207 = vunpack.c.l.b16 %v161
      %v208 = vunpack.c.h.b16 %v161
      %v209 = vunpack.c.l.b16 %v162
      %v210 = vunpack.c.h.b16 %v162
      %v211 = vunpack.c.l.b16 %v163
      %v212 = vunpack.c.h.b16 %v163
      %v213 = vunpack.c.l.b16 %v164
      %v214 = vunpack.c.h.b16 %v164
      %v215 = vunpack.c.l.b16 %v165
      %v216 = vunpack.c.h.b16 %v165
      %v217 = vunpack.c.l.b16 %v166
      %v218 = vunpack.c.h.b16 %v166
      %v219 = vunpack.c.l.b16 %v167
      %v220 = vunpack.c.h.b16 %v167
      %v221 = vpack.c.b16 %v193, %v189
      %v222 = vpack.c.b16 %v194, %v190
      %v223 = vpack.c.b16 %v195, %v191
      %v224 = vpack.c.b16 %v196, %v192
      %v225 = vpack.c.b16 %v201, %v197
      %v226 = vpack.c.b16 %v202, %v198
      %v227 = vpack.c.b16 %v203, %v199
      %v228 = vpack.c.b16 %v204, %v200
      %v229 = vpack.c.b16 %v209, %v205
      %v230 = vpack.c.b16 %v210, %v206
      %v231 = vpack.c.b16 %v211, %v207
      %v232 = vpack.c.b16 %v212, %v208
      %v233 = vpack.c.b16 %v217, %v213
      %v234 = vpack.c.b16 %v218, %v214
      %v235 = vpack.c.b16 %v219, %v215
      %v236 = vpack.c.b16 %v220, %v216
      %vm253 = vcmask 523264
      %v255 = vsel %vm253, %v172, 0
      %257 = vmatpush.bf16.msra.mxu0 0
      %258 = vmatpush.bf16.msra.mxu0 0
      %259 = vmatpush.bf16.msra.mxu0 0
      %260 = vmatpush.bf16.msra.mxu0 0
      %261 = vmatpush.bf16.msra.mxu0 %v233
      %262 = vmatpush.bf16.msra.mxu0 %v229
      %263 = vmatpush.bf16.msra.mxu0 %v225
      %264 = vmatpush.bf16.msra.mxu0 %v221
      %265 = vmatmul.bf16.gmra.mxu0 %v255
      %v266 = vpop.f32.mrf.mxu0
      %v267 = vadd.f32 0.0, %v266
      %v268 = vpop.f32.mrf.mxu0
      %v269 = vadd.f32 0.0, %v268
      %270 = vdwg.mxu0
      %271 = vmatpush.bf16.msra.mxu0 0
      %272 = vmatpush.bf16.msra.mxu0 0
      %273 = vmatpush.bf16.msra.mxu0 0
      %274 = vmatpush.bf16.msra.mxu0 0
      %275 = vmatpush.bf16.msra.mxu0 %v234
      %276 = vmatpush.bf16.msra.mxu0 %v230
      %277 = vmatpush.bf16.msra.mxu0 %v226
      %278 = vmatpush.bf16.msra.mxu0 %v222
      %279 = vmatmul.bf16.gmra.mxu0 %v255
      %v280 = vpop.f32.mrf.mxu0
      %v281 = vadd.f32 0.0, %v280
      %v282 = vpop.f32.mrf.mxu0
      %v283 = vadd.f32 0.0, %v282
      %284 = vdwg.mxu0
      %285 = vmatpush.bf16.msra.mxu0 0
      %286 = vmatpush.bf16.msra.mxu0 0
      %287 = vmatpush.bf16.msra.mxu0 0
      %288 = vmatpush.bf16.msra.mxu0 0
      %289 = vmatpush.bf16.msra.mxu0 %v235
      %290 = vmatpush.bf16.msra.mxu0 %v231
      %291 = vmatpush.bf16.msra.mxu0 %v227
      %292 = vmatpush.bf16.msra.mxu0 %v223
      %293 = vmatmul.bf16.gmra.mxu0 %v255
      %v294 = vpop.f32.mrf.mxu0
      %v295 = vadd.f32 0.0, %v294
      %v296 = vpop.f32.mrf.mxu0
      %v297 = vadd.f32 0.0, %v296
      %298 = vdwg.mxu0
      %299 = vmatpush.bf16.msra.mxu0 0
      %300 = vmatpush.bf16.msra.mxu0 0
      %301 = vmatpush.bf16.msra.mxu0 0
      %302 = vmatpush.bf16.msra.mxu0 0
      %303 = vmatpush.bf16.msra.mxu0 %v236
      %304 = vmatpush.bf16.msra.mxu0 %v232
      %305 = vmatpush.bf16.msra.mxu0 %v228
      %306 = vmatpush.bf16.msra.mxu0 %v224
      %307 = vmatmul.bf16.gmra.mxu0 %v255
      %v308 = vpop.f32.mrf.mxu0
      %v309 = vadd.f32 0.0, %v308
      %v310 = vpop.f32.mrf.mxu0
      %v311 = vadd.f32 0.0, %v310
      %312 = vdwg.mxu0
      %313 = vst [vmem:[%s147] sm:$0xff] %v267
      %314 = vst [vmem:[%s147 + $0x8] sm:$0xff] %v281
      %315 = vst [vmem:[%s147 + $0x10] sm:$0xff] %v295
      %316 = vst [vmem:[%s147 + $0x18] sm:$0xff] %v309
      %317 = vst [vmem:[%s147 + $0x20] sm:$0xff] %v269
      %318 = vst [vmem:[%s147 + $0x28] sm:$0xff] %v283
      %319 = vst [vmem:[%s147 + $0x30] sm:$0xff] %v297
      %320 = vst [vmem:[%s147 + $0x38] sm:$0xff] %v311
      %s321 = smul.u32 2, %s13
      %p322 = scmp.lt.s32.totalorder %s321, 3
      %s323 = scalar_select %p322, %s321, 3
      %s324 = smul.addr %s323, 4
      %s325 = smul.addr %s324, 8
      %s326 = scalar_lea.vmem %s2, %s325
      // Predicated region
      $region29: #{netG_forward.6} parent=27 // pred_check
        %p327 = pneg %p78
      $region30: #{netG_forward.6} parent=27 // pred_check_branch
        %329 = sbr.rel (%p327) target = $region32
      $region31: #{netG_forward.6} parent=27 // pred_region
        %s330 = smul.u32 2, %s13
      $region32: #{netG_forward.6} parent=27 // pred_fallthru
        _
    $region28: #{netG_forward.6} parent=5 // pred_fallthru
      _
    %p331 = scmp.le.s32.totalorder 2, %s8
    // Predicated region
    $region33: #{netG_forward.6} parent=5 // pred_check
      %p332 = pneg %p331
    $region34: #{netG_forward.6} parent=5 // pred_check_branch
      %334 = sbr.rel (%p332) target = $region36
    $region35: #{netG_forward.6} parent=5 // pred_region
      %s335 = ssub.s32 %s8, 2
      // Predicated region
      $region37: #{netG_forward.6} parent=35 // pred_check
        %p336 = pneg %p84
      $region38: #{netG_forward.6} parent=35 // pred_check_branch
        %338 = sbr.rel (%p336) target = $region40
      $region39: #{netG_forward.6} parent=35 // pred_region
        %s339 = smul.u32 2, %s14
        %p340 = scmp.lt.s32.totalorder %s339, 3
        %s341 = scalar_select %p340, %s339, 3
        %s342 = smul.addr %s341, 4
        %s343 = smul.addr %s342, 8
        %s344 = scalar_lea.vmem %s2, %s343
      $region40: #{netG_forward.6} parent=35 // pred_fallthru
        _
    $region36: #{netG_forward.6} parent=5 // pred_fallthru
      _
  $region6: #{netG_forward.6} parent=0 // loop_footer
    %s12 = sadd.s32 1, %s8
  $region7: #{netG_forward.6} parent=0 // loop_footer_branch
    %7 = sbr.rel target = $region3
  $region8: #{netG_forward.6} parent=0 // loop_exit
    _

// kernel: netG_forward.7
$region0: #{netG_forward.7}
  #allocation0 [shape = 'u32[]', space=smem, size = 0x4, offset = 0x4, fixed_abs, tag = 'smem constant byte address 0x4 - core index']
  #allocation1 [shape = 'u32[72,128]{1,0:T(1,128)}', space=vmem, size = 0x9000, scoped, tag = 'internal scratch']
  %s0 = inlined_call_operand.vmem [shape: bf16[128,32], index: 0, kind: input, shape index: {}]
  %s1 = inlined_call_operand.vmem [shape: bf16[32,256], index: 1, kind: input, shape index: {}]
  %s2 = inlined_call_operand.vmem [shape: f32[128,256], index: 2, kind: output, shape index: {}]
  %s3 = sld [smem:[#allocation0]]
  $region41: #{netG_forward.7} parent=0
    _
  %s5 = ssub.s32 1, %s3
  %s6 = scalar_select 0, %s5, %s3
  loop: start=0, step=1, limit=4
  $region2: #{netG_forward.7} parent=0 // loop_pre_header
    _
  $region3: #{netG_forward.7} parent=0 // loop_header
    %s8 = sphi 0, %s12
    %p9 = scmp.ge.s32.totalorder %s8, 4
    %s18 = sphi 0, %s20
    %s21 = sphi 0, %s18
    %s22 = sphi 0, %s21
    %s38 = sphi 0, %s22
    %s42 = sphi 0, %s42
    %s44 = sphi 0, %s42
    %s45 = sphi 0, %s44
    %s59 = sphi 0, %s45
    %s65 = sphi 0, %s67
    %s68 = sphi 0, %s65
    %s69 = sphi 0, %s68
    %s85 = sphi 0, %s69
  $region4: #{netG_forward.7} parent=0 // loop_header_branch
    %11 = sbr.rel (%p9) target = $region8
  $region5: #{netG_forward.7} parent=0 // loop_body
    %s13 = ssub.s32 %s8, 1
    %s14 = ssub.s32 %s8, 2
    %s15 = sadd.s32 %s8, 1
    %s16 = ssub.s32 %s8, %s15
    %p17 = scmp.eq.s32.totalorder %s16, 0
    %s19 = sadd.s32 %s18, 1
    %s20 = scalar_select %p17, %s18, %s19
    %p23 = pneg %p17
    %p24 = scmp.eq.s32.totalorder %s8, 1
    %p25 = por %p23, %p24
    %p26 = scmp.ne.s32.totalorder %s18, %s21
    %p27 = scmp.eq.s32.totalorder %s8, 0
    %p28 = por %p26, %p27
    %p29 = scmp.ne.s32.totalorder %s18, %s21
    %p30 = scmp.eq.s32.totalorder %s13, 1
    %p31 = por %p29, %p30
    %p32 = scmp.ne.s32.totalorder %s21, %s22
    %p33 = scmp.eq.s32.totalorder %s13, 0
    %p34 = por %p32, %p33
    %p35 = scmp.ne.s32.totalorder %s21, %s22
    %p36 = scmp.eq.s32.totalorder %s14, 1
    %p37 = por %p35, %p36
    %p39 = scmp.ne.s32.totalorder %s22, %s38
    %p40 = scmp.eq.s32.totalorder %s14, 0
    %p41 = por %p39, %p40
    %s43 = sadd.s32 %s42, 1
    %p46 = scmp.eq.s32.totalorder %s8, 1
    %p47 = scmp.ne.s32.totalorder %s42, %s44
    %p48 = scmp.eq.s32.totalorder %s8, 0
    %p49 = por %p47, %p48
    %p50 = scmp.ne.s32.totalorder %s42, %s44
    %p51 = scmp.eq.s32.totalorder %s13, 1
    %p52 = por %p50, %p51
    %p53 = scmp.ne.s32.totalorder %s44, %s45
    %p54 = scmp.eq.s32.totalorder %s13, 0
    %p55 = por %p53, %p54
    %p56 = scmp.ne.s32.totalorder %s44, %s45
    %p57 = scmp.eq.s32.totalorder %s14, 1
    %p58 = por %p56, %p57
    %p60 = scmp.ne.s32.totalorder %s45, %s59
    %p61 = scmp.eq.s32.totalorder %s14, 0
    %p62 = por %p60, %p61
    %s63 = ssub.s32 %s8, %s15
    %p64 = scmp.eq.s32.totalorder %s63, 0
    %s66 = sadd.s32 %s65, 1
    %s67 = scalar_select %p64, %s65, %s66
    %p70 = pneg %p64
    %p71 = scmp.eq.s32.totalorder %s8, 1
    %p72 = por %p70, %p71
    %p73 = scmp.ne.s32.totalorder %s65, %s68
    %p74 = scmp.eq.s32.totalorder %s8, 0
    %p75 = por %p73, %p74
    %p76 = scmp.ne.s32.totalorder %s65, %s68
    %p77 = scmp.eq.s32.totalorder %s13, 1
    %p78 = por %p76, %p77
    %p79 = scmp.ne.s32.totalorder %s68, %s69
    %p80 = scmp.eq.s32.totalorder %s13, 0
    %p81 = por %p79, %p80
    %p82 = scmp.ne.s32.totalorder %s68, %s69
    %p83 = scmp.eq.s32.totalorder %s14, 1
    %p84 = por %p82, %p83
    %p86 = scmp.ne.s32.totalorder %s69, %s85
    %p87 = scmp.eq.s32.totalorder %s14, 0
    %p88 = por %p86, %p87
    %p89 = scmp.le.s32.totalorder 1, %s8
    %p90 = scmp.lt.s32.totalorder %s8, 3
    %p91 = pnand %p89, %p90
    %p92 = pneg %p91
    // Predicated region
    $region9: #{netG_forward.7} parent=5 // pred_check
      _
    $region10: #{netG_forward.7} parent=5 // pred_check_branch
      %94 = sbr.rel (%p91) target = $region12
    $region11: #{netG_forward.7} parent=5 // pred_region
      %s95 = ssub.s32 %s8, 1
      // Predicated region
      $region13: #{netG_forward.7} parent=11 // pred_check
        %p96 = pneg %p55
      $region14: #{netG_forward.7} parent=11 // pred_check_branch
        %98 = sbr.rel (%p96) target = $region16
      $region15: #{netG_forward.7} parent=11 // pred_region
        _
      $region16: #{netG_forward.7} parent=11 // pred_fallthru
        _
    $region12: #{netG_forward.7} parent=5 // pred_fallthru
      _
    %p99 = scmp.lt.s32.totalorder %s8, 2
    // Predicated region
    $region17: #{netG_forward.7} parent=5 // pred_check
      %p100 = pneg %p99
    $region18: #{netG_forward.7} parent=5 // pred_check_branch
      %102 = sbr.rel (%p100) target = $region20
    $region19: #{netG_forward.7} parent=5 // pred_region
      // Predicated region
      $region21: #{netG_forward.7} parent=19 // pred_check
        %p103 = pneg %p28
      $region22: #{netG_forward.7} parent=19 // pred_check_branch
        %105 = sbr.rel (%p103) target = $region24
      $region23: #{netG_forward.7} parent=19 // pred_region
        %s106 = smul.u32 8, %s8
        %p107 = scmp.lt.s32.totalorder %s106, 15
        %s108 = scalar_select %p107, %s106, 15
        %s109 = smul.addr %s108, 4
        %s110 = scalar_lea.vmem %s0, %s109
        %s111 = smul.u32 8, %s8
      $region24: #{netG_forward.7} parent=19 // pred_fallthru
        _
    $region20: #{netG_forward.7} parent=5 // pred_fallthru
      _
    %p112 = scmp.le.s32.totalorder 1, %s8
    %p113 = scmp.lt.s32.totalorder %s8, 3
    %p114 = pnand %p112, %p113
    %p115 = pneg %p114
    // Predicated region
    $region25: #{netG_forward.7} parent=5 // pred_check
      _
    $region26: #{netG_forward.7} parent=5 // pred_check_branch
      %117 = sbr.rel (%p114) target = $region28
    $region27: #{netG_forward.7} parent=5 // pred_region
      %s118 = ssub.s32 %s8, 1
      %s119 = smul.u32 8, %s13
      %p120 = scmp.lt.s32.totalorder %s119, 15
      %s121 = scalar_select %p120, %s119, 15
      %s122 = smul.addr %s121, 4
      %s123 = scalar_lea.vmem %s0, %s122
      %p124 = pneg %p34
      %p125 = pneg %p31
      %p126 = pneg %p55
      %p127 = pneg %p52
      %p128 = pneg %p81
      %p129 = pneg %p78
      %s130 = smul.u32 8, %s13
      %p131 = scmp.lt.s32.totalorder %s130, 15
      %s132 = scalar_select %p131, %s130, 15
      %s133 = smul.addr %s132, 2
      %s134 = smul.addr %s133, 8
      %s135 = scalar_lea.vmem %s2, %s134
      %s136 = smul.u32 8, %s13
      %p137 = scmp.lt.s32.totalorder %s136, 15
      %s138 = scalar_select %p137, %s136, 15
      %s139 = smul.addr %s138, 4
      %s140 = scalar_lea.vmem %s0, %s139
      %s141 = smul.u32 8, %s13
      %s142 = smul.u32 8, %s13
      %p143 = scmp.lt.s32.totalorder %s142, 15
      %s144 = scalar_select %p143, %s142, 15
      %s145 = smul.addr %s144, 2
      %s146 = smul.addr %s145, 8
      %s147 = scalar_lea.vmem %s2, %s146
      %s148 = smul.u32 8, %s13
      %v150 = vld [vmem:[%s140] sm:$0xf]
      %v151 = vld [vmem:[%s140 + $0x4] sm:$0xf]
      %v152 = vld [vmem:[%s140 + $0x8] sm:$0xf]
      %v153 = vld [vmem:[%s140 + $0xc] sm:$0xf]
      %v154 = vld [vmem:[%s140 + $0x10] sm:$0xf]
      %v155 = vld [vmem:[%s140 + $0x14] sm:$0xf]
      %v156 = vld [vmem:[%s140 + $0x18] sm:$0xf]
      %v157 = vld [vmem:[%s140 + $0x1c] sm:$0xf]
      %v158 = vld [vmem:[%s1] sm:$0xff]
      %v159 = vld [vmem:[%s1 + $0x8] sm:$0xff]
      %v160 = vld [vmem:[%s1 + $0x10] sm:$0xff]
      %v161 = vld [vmem:[%s1 + $0x18] sm:$0xff]
      %v170 = vunpack.c.l.b16 %v150
      %v171 = vunpack.c.l.b16 %v151
      %v172 = vunpack.c.l.b16 %v152
      %v173 = vunpack.c.l.b16 %v153
      %v174 = vunpack.c.l.b16 %v154
      %v175 = vunpack.c.l.b16 %v155
      %v176 = vunpack.c.l.b16 %v156
      %v177 = vunpack.c.l.b16 %v157
      %v178 = vpack.c.b16 %v171, %v170
      %v179 = vpack.c.b16 %v173, %v172
      %v180 = vpack.c.b16 %v175, %v174
      %v181 = vpack.c.b16 %v177, %v176
      %v186 = vunpack.c.l.b16 %v158
      %v187 = vunpack.c.h.b16 %v158
      %v188 = vunpack.c.l.b16 %v159
      %v189 = vunpack.c.h.b16 %v159
      %v190 = vunpack.c.l.b16 %v160
      %v191 = vunpack.c.h.b16 %v160
      %v192 = vunpack.c.l.b16 %v161
      %v193 = vunpack.c.h.b16 %v161
      %v194 = vpack.c.b16 %v188, %v186
      %v195 = vpack.c.b16 %v189, %v187
      %v196 = vpack.c.b16 %v192, %v190
      %v197 = vpack.c.b16 %v193, %v191
      %vm202 = vcmask 261120
      %v204 = vsel %vm202, %v178, 0
      %v207 = vsel %vm202, %v179, 0
      %v210 = vsel %vm202, %v180, 0
      %v213 = vsel %vm202, %v181, 0
      %215 = vmatpush.bf16.msra.mxu0 0
      %216 = vmatpush.bf16.msra.mxu0 0
      %217 = vmatpush.bf16.msra.mxu0 0
      %218 = vmatpush.bf16.msra.mxu0 0
      %219 = vmatpush.bf16.msra.mxu0 0
      %220 = vmatpush.bf16.msra.mxu0 0
      %221 = vmatpush.bf16.msra.mxu0 %v196
      %222 = vmatpush.bf16.msra.mxu0 %v194
      %223 = vmatmul.bf16.gmra.mxu0 %v204
      %v224 = vpop.f32.mrf.mxu0
      %v225 = vadd.f32 0.0, %v224
      %v226 = vpop.f32.mrf.mxu0
      %v227 = vadd.f32 0.0, %v226
      %228 = vmatmul.bf16.gmra.mxu0 %v207
      %v229 = vpop.f32.mrf.mxu0
      %v230 = vadd.f32 0.0, %v229
      %v231 = vpop.f32.mrf.mxu0
      %v232 = vadd.f32 0.0, %v231
      %233 = vmatmul.bf16.gmra.mxu0 %v210
      %v234 = vpop.f32.mrf.mxu0
      %v235 = vadd.f32 0.0, %v234
      %v236 = vpop.f32.mrf.mxu0
      %v237 = vadd.f32 0.0, %v236
      %238 = vmatmul.bf16.gmra.mxu0 %v213
      %v239 = vpop.f32.mrf.mxu0
      %v240 = vadd.f32 0.0, %v239
      %v241 = vpop.f32.mrf.mxu0
      %v242 = vadd.f32 0.0, %v241
      %243 = vdwg.mxu0
      %244 = vmatpush.bf16.msra.mxu0 0
      %245 = vmatpush.bf16.msra.mxu0 0
      %246 = vmatpush.bf16.msra.mxu0 0
      %247 = vmatpush.bf16.msra.mxu0 0
      %248 = vmatpush.bf16.msra.mxu0 0
      %249 = vmatpush.bf16.msra.mxu0 0
      %250 = vmatpush.bf16.msra.mxu0 %v197
      %251 = vmatpush.bf16.msra.mxu0 %v195
      %252 = vmatmul.bf16.gmra.mxu0 %v204
      %v253 = vpop.f32.mrf.mxu0
      %v254 = vadd.f32 0.0, %v253
      %v255 = vpop.f32.mrf.mxu0
      %v256 = vadd.f32 0.0, %v255
      %257 = vmatmul.bf16.gmra.mxu0 %v207
      %v258 = vpop.f32.mrf.mxu0
      %v259 = vadd.f32 0.0, %v258
      %v260 = vpop.f32.mrf.mxu0
      %v261 = vadd.f32 0.0, %v260
      %262 = vmatmul.bf16.gmra.mxu0 %v210
      %v263 = vpop.f32.mrf.mxu0
      %v264 = vadd.f32 0.0, %v263
      %v265 = vpop.f32.mrf.mxu0
      %v266 = vadd.f32 0.0, %v265
      %267 = vmatmul.bf16.gmra.mxu0 %v213
      %v268 = vpop.f32.mrf.mxu0
      %v269 = vadd.f32 0.0, %v268
      %v270 = vpop.f32.mrf.mxu0
      %v271 = vadd.f32 0.0, %v270
      %272 = vdwg.mxu0
      %273 = vst [vmem:[%s147] sm:$0xff] %v225
      %274 = vst [vmem:[%s147 + $0x8] sm:$0xff] %v254
      %275 = vst [vmem:[%s147 + $0x10] sm:$0xff] %v227
      %276 = vst [vmem:[%s147 + $0x18] sm:$0xff] %v256
      %277 = vst [vmem:[%s147 + $0x20] sm:$0xff] %v230
      %278 = vst [vmem:[%s147 + $0x28] sm:$0xff] %v259
      %279 = vst [vmem:[%s147 + $0x30] sm:$0xff] %v232
      %280 = vst [vmem:[%s147 + $0x38] sm:$0xff] %v261
      %281 = vst [vmem:[%s147 + $0x40] sm:$0xff] %v235
      %282 = vst [vmem:[%s147 + $0x48] sm:$0xff] %v264
      %283 = vst [vmem:[%s147 + $0x50] sm:$0xff] %v237
      %284 = vst [vmem:[%s147 + $0x58] sm:$0xff] %v266
      %285 = vst [vmem:[%s147 + $0x60] sm:$0xff] %v240
      %286 = vst [vmem:[%s147 + $0x68] sm:$0xff] %v269
      %287 = vst [vmem:[%s147 + $0x70] sm:$0xff] %v242
      %288 = vst [vmem:[%s147 + $0x78] sm:$0xff] %v271
      %s289 = smul.u32 8, %s13
      %p290 = scmp.lt.s32.totalorder %s289, 15
      %s291 = scalar_select %p290, %s289, 15
      %s292 = smul.addr %s291, 2
      %s293 = smul.addr %s292, 8
      %s294 = scalar_lea.vmem %s2, %s293
      // Predicated region
      $region29: #{netG_forward.7} parent=27 // pred_check
        %p295 = pneg %p78
      $region30: #{netG_forward.7} parent=27 // pred_check_branch
        %297 = sbr.rel (%p295) target = $region32
      $region31: #{netG_forward.7} parent=27 // pred_region
        %s298 = smul.u32 8, %s13
      $region32: #{netG_forward.7} parent=27 // pred_fallthru
        _
    $region28: #{netG_forward.7} parent=5 // pred_fallthru
      _
    %p299 = scmp.le.s32.totalorder 2, %s8
    // Predicated region
    $region33: #{netG_forward.7} parent=5 // pred_check
      %p300 = pneg %p299
    $region34: #{netG_forward.7} parent=5 // pred_check_branch
      %302 = sbr.rel (%p300) target = $region36
    $region35: #{netG_forward.7} parent=5 // pred_region
      %s303 = ssub.s32 %s8, 2
      // Predicated region
      $region37: #{netG_forward.7} parent=35 // pred_check
        %p304 = pneg %p84
      $region38: #{netG_forward.7} parent=35 // pred_check_branch
        %306 = sbr.rel (%p304) target = $region40
      $region39: #{netG_forward.7} parent=35 // pred_region
        %s307 = smul.u32 8, %s14
        %p308 = scmp.lt.s32.totalorder %s307, 15
        %s309 = scalar_select %p308, %s307, 15
        %s310 = smul.addr %s309, 2
        %s311 = smul.addr %s310, 8
        %s312 = scalar_lea.vmem %s2, %s311
      $region40: #{netG_forward.7} parent=35 // pred_fallthru
        _
    $region36: #{netG_forward.7} parent=5 // pred_fallthru
      _
  $region6: #{netG_forward.7} parent=0 // loop_footer
    %s12 = sadd.s32 1, %s8
  $region7: #{netG_forward.7} parent=0 // loop_footer_branch
    %7 = sbr.rel target = $region3
  $region8: #{netG_forward.7} parent=0 // loop_exit
    _

// kernel: netG_forward.8
$region0: #{netG_forward.8}
  #allocation0 [shape = 'u32[]', space=smem, size = 0x4, offset = 0x4, fixed_abs, tag = 'smem constant byte address 0x4 - core index']
  #allocation1 [shape = 'u32[72,128]{1,0:T(1,128)}', space=vmem, size = 0x9000, scoped, tag = 'internal scratch']
  %s0 = inlined_call_operand.vmem [shape: bf16[512,16], index: 0, kind: input, shape index: {}]
  %s1 = inlined_call_operand.vmem [shape: bf16[16,128], index: 1, kind: input, shape index: {}]
  %s2 = inlined_call_operand.vmem [shape: f32[512,128], index: 2, kind: output, shape index: {}]
  %s3 = sld [smem:[#allocation0]]
  $region41: #{netG_forward.8} parent=0
    _
  %s5 = ssub.s32 1, %s3
  %s6 = scalar_select 0, %s5, %s3
  loop: start=0, step=1, limit=4
  $region2: #{netG_forward.8} parent=0 // loop_pre_header
    _
  $region3: #{netG_forward.8} parent=0 // loop_header
    %s8 = sphi 0, %s12
    %p9 = scmp.ge.s32.totalorder %s8, 4
    %s18 = sphi 0, %s20
    %s21 = sphi 0, %s18
    %s22 = sphi 0, %s21
    %s38 = sphi 0, %s22
    %s42 = sphi 0, %s42
    %s44 = sphi 0, %s42
    %s45 = sphi 0, %s44
    %s59 = sphi 0, %s45
    %s65 = sphi 0, %s67
    %s68 = sphi 0, %s65
    %s69 = sphi 0, %s68
    %s85 = sphi 0, %s69
  $region4: #{netG_forward.8} parent=0 // loop_header_branch
    %11 = sbr.rel (%p9) target = $region8
  $region5: #{netG_forward.8} parent=0 // loop_body
    %s13 = ssub.s32 %s8, 1
    %s14 = ssub.s32 %s8, 2
    %s15 = sadd.s32 %s8, 1
    %s16 = ssub.s32 %s8, %s15
    %p17 = scmp.eq.s32.totalorder %s16, 0
    %s19 = sadd.s32 %s18, 1
    %s20 = scalar_select %p17, %s18, %s19
    %p23 = pneg %p17
    %p24 = scmp.eq.s32.totalorder %s8, 1
    %p25 = por %p23, %p24
    %p26 = scmp.ne.s32.totalorder %s18, %s21
    %p27 = scmp.eq.s32.totalorder %s8, 0
    %p28 = por %p26, %p27
    %p29 = scmp.ne.s32.totalorder %s18, %s21
    %p30 = scmp.eq.s32.totalorder %s13, 1
    %p31 = por %p29, %p30
    %p32 = scmp.ne.s32.totalorder %s21, %s22
    %p33 = scmp.eq.s32.totalorder %s13, 0
    %p34 = por %p32, %p33
    %p35 = scmp.ne.s32.totalorder %s21, %s22
    %p36 = scmp.eq.s32.totalorder %s14, 1
    %p37 = por %p35, %p36
    %p39 = scmp.ne.s32.totalorder %s22, %s38
    %p40 = scmp.eq.s32.totalorder %s14, 0
    %p41 = por %p39, %p40
    %s43 = sadd.s32 %s42, 1
    %p46 = scmp.eq.s32.totalorder %s8, 1
    %p47 = scmp.ne.s32.totalorder %s42, %s44
    %p48 = scmp.eq.s32.totalorder %s8, 0
    %p49 = por %p47, %p48
    %p50 = scmp.ne.s32.totalorder %s42, %s44
    %p51 = scmp.eq.s32.totalorder %s13, 1
    %p52 = por %p50, %p51
    %p53 = scmp.ne.s32.totalorder %s44, %s45
    %p54 = scmp.eq.s32.totalorder %s13, 0
    %p55 = por %p53, %p54
    %p56 = scmp.ne.s32.totalorder %s44, %s45
    %p57 = scmp.eq.s32.totalorder %s14, 1
    %p58 = por %p56, %p57
    %p60 = scmp.ne.s32.totalorder %s45, %s59
    %p61 = scmp.eq.s32.totalorder %s14, 0
    %p62 = por %p60, %p61
    %s63 = ssub.s32 %s8, %s15
    %p64 = scmp.eq.s32.totalorder %s63, 0
    %s66 = sadd.s32 %s65, 1
    %s67 = scalar_select %p64, %s65, %s66
    %p70 = pneg %p64
    %p71 = scmp.eq.s32.totalorder %s8, 1
    %p72 = por %p70, %p71
    %p73 = scmp.ne.s32.totalorder %s65, %s68
    %p74 = scmp.eq.s32.totalorder %s8, 0
    %p75 = por %p73, %p74
    %p76 = scmp.ne.s32.totalorder %s65, %s68
    %p77 = scmp.eq.s32.totalorder %s13, 1
    %p78 = por %p76, %p77
    %p79 = scmp.ne.s32.totalorder %s68, %s69
    %p80 = scmp.eq.s32.totalorder %s13, 0
    %p81 = por %p79, %p80
    %p82 = scmp.ne.s32.totalorder %s68, %s69
    %p83 = scmp.eq.s32.totalorder %s14, 1
    %p84 = por %p82, %p83
    %p86 = scmp.ne.s32.totalorder %s69, %s85
    %p87 = scmp.eq.s32.totalorder %s14, 0
    %p88 = por %p86, %p87
    %p89 = scmp.le.s32.totalorder 1, %s8
    %p90 = scmp.lt.s32.totalorder %s8, 3
    %p91 = pnand %p89, %p90
    %p92 = pneg %p91
    // Predicated region
    $region9: #{netG_forward.8} parent=5 // pred_check
      _
    $region10: #{netG_forward.8} parent=5 // pred_check_branch
      %94 = sbr.rel (%p91) target = $region12
    $region11: #{netG_forward.8} parent=5 // pred_region
      %s95 = ssub.s32 %s8, 1
      // Predicated region
      $region13: #{netG_forward.8} parent=11 // pred_check
        %p96 = pneg %p55
      $region14: #{netG_forward.8} parent=11 // pred_check_branch
        %98 = sbr.rel (%p96) target = $region16
      $region15: #{netG_forward.8} parent=11 // pred_region
        _
      $region16: #{netG_forward.8} parent=11 // pred_fallthru
        _
    $region12: #{netG_forward.8} parent=5 // pred_fallthru
      _
    %p99 = scmp.lt.s32.totalorder %s8, 2
    // Predicated region
    $region17: #{netG_forward.8} parent=5 // pred_check
      %p100 = pneg %p99
    $region18: #{netG_forward.8} parent=5 // pred_check_branch
      %102 = sbr.rel (%p100) target = $region20
    $region19: #{netG_forward.8} parent=5 // pred_region
      // Predicated region
      $region21: #{netG_forward.8} parent=19 // pred_check
        %p103 = pneg %p28
      $region22: #{netG_forward.8} parent=19 // pred_check_branch
        %105 = sbr.rel (%p103) target = $region24
      $region23: #{netG_forward.8} parent=19 // pred_region
        %s106 = smul.u32 32, %s8
        %p107 = scmp.lt.s32.totalorder %s106, 63
        %s108 = scalar_select %p107, %s106, 63
        %s109 = smul.addr %s108, 4
        %s110 = scalar_lea.vmem %s0, %s109
        %s111 = smul.u32 32, %s8
      $region24: #{netG_forward.8} parent=19 // pred_fallthru
        _
    $region20: #{netG_forward.8} parent=5 // pred_fallthru
      _
    %p112 = scmp.le.s32.totalorder 1, %s8
    %p113 = scmp.lt.s32.totalorder %s8, 3
    %p114 = pnand %p112, %p113
    %p115 = pneg %p114
    // Predicated region
    $region25: #{netG_forward.8} parent=5 // pred_check
      _
    $region26: #{netG_forward.8} parent=5 // pred_check_branch
      %117 = sbr.rel (%p114) target = $region28
    $region27: #{netG_forward.8} parent=5 // pred_region
      %s118 = ssub.s32 %s8, 1
      %s119 = smul.u32 32, %s13
      %p120 = scmp.lt.s32.totalorder %s119, 63
      %s121 = scalar_select %p120, %s119, 63
      %s122 = smul.addr %s121, 4
      %s123 = scalar_lea.vmem %s0, %s122
      %p124 = pneg %p34
      %p125 = pneg %p31
      %p126 = pneg %p55
      %p127 = pneg %p52
      %p128 = pneg %p81
      %p129 = pneg %p78
      %s130 = smul.u32 32, %s13
      %p131 = scmp.lt.s32.totalorder %s130, 63
      %s132 = scalar_select %p131, %s130, 63
      %s133 = smul.addr %s132, 8
      %s134 = scalar_lea.vmem %s2, %s133
      %s135 = smul.u32 32, %s13
      %p136 = scmp.lt.s32.totalorder %s135, 63
      %s137 = scalar_select %p136, %s135, 63
      %s138 = smul.addr %s137, 4
      %s139 = scalar_lea.vmem %s0, %s138
      %s140 = smul.u32 32, %s13
      %s141 = smul.u32 32, %s13
      %p142 = scmp.lt.s32.totalorder %s141, 63
      %s143 = scalar_select %p142, %s141, 63
      %s144 = smul.addr %s143, 8
      %s145 = scalar_lea.vmem %s2, %s144
      %s146 = smul.u32 32, %s13
      %v148 = vld [vmem:[%s139] sm:$0xf]
      %v149 = vld [vmem:[%s139 + $0x4] sm:$0xf]
      %v150 = vld [vmem:[%s139 + $0x8] sm:$0xf]
      %v151 = vld [vmem:[%s139 + $0xc] sm:$0xf]
      %v152 = vld [vmem:[%s139 + $0x10] sm:$0xf]
      %v153 = vld [vmem:[%s139 + $0x14] sm:$0xf]
      %v154 = vld [vmem:[%s139 + $0x18] sm:$0xf]
      %v155 = vld [vmem:[%s139 + $0x1c] sm:$0xf]
      %v156 = vld [vmem:[%s139 + $0x20] sm:$0xf]
      %v157 = vld [vmem:[%s139 + $0x24] sm:$0xf]
      %v158 = vld [vmem:[%s139 + $0x28] sm:$0xf]
      %v159 = vld [vmem:[%s139 + $0x2c] sm:$0xf]
      %v160 = vld [vmem:[%s139 + $0x30] sm:$0xf]
      %v161 = vld [vmem:[%s139 + $0x34] sm:$0xf]
      %v162 = vld [vmem:[%s139 + $0x38] sm:$0xf]
      %v163 = vld [vmem:[%s139 + $0x3c] sm:$0xf]
      %v164 = vld [vmem:[%s139 + $0x40] sm:$0xf]
      %v165 = vld [vmem:[%s139 + $0x44] sm:$0xf]
      %v166 = vld [vmem:[%s139 + $0x48] sm:$0xf]
      %v167 = vld [vmem:[%s139 + $0x4c] sm:$0xf]
      %v168 = vld [vmem:[%s139 + $0x50] sm:$0xf]
      %v169 = vld [vmem:[%s139 + $0x54] sm:$0xf]
      %v170 = vld [vmem:[%s139 + $0x58] sm:$0xf]
      %v171 = vld [vmem:[%s139 + $0x5c] sm:$0xf]
      %v172 = vld [vmem:[%s139 + $0x60] sm:$0xf]
      %v173 = vld [vmem:[%s139 + $0x64] sm:$0xf]
      %v174 = vld [vmem:[%s139 + $0x68] sm:$0xf]
      %v175 = vld [vmem:[%s139 + $0x6c] sm:$0xf]
      %v176 = vld [vmem:[%s139 + $0x70] sm:$0xf]
      %v177 = vld [vmem:[%s139 + $0x74] sm:$0xf]
      %v178 = vld [vmem:[%s139 + $0x78] sm:$0xf]
      %v179 = vld [vmem:[%s139 + $0x7c] sm:$0xf]
      %v180 = vld [vmem:[%s1] sm:$0xf]
      %v181 = vld [vmem:[%s1 + $0x4] sm:$0xf]
      %v214 = vunpack.c.l.b16 %v148
      %v215 = vunpack.c.l.b16 %v149
      %v216 = vunpack.c.l.b16 %v150
      %v217 = vunpack.c.l.b16 %v151
      %v218 = vunpack.c.l.b16 %v152
      %v219 = vunpack.c.l.b16 %v153
      %v220 = vunpack.c.l.b16 %v154
      %v221 = vunpack.c.l.b16 %v155
      %v222 = vunpack.c.l.b16 %v156
      %v223 = vunpack.c.l.b16 %v157
      %v224 = vunpack.c.l.b16 %v158
      %v225 = vunpack.c.l.b16 %v159
      %v226 = vunpack.c.l.b16 %v160
      %v227 = vunpack.c.l.b16 %v161
      %v228 = vunpack.c.l.b16 %v162
      %v229 = vunpack.c.l.b16 %v163
      %v230 = vunpack.c.l.b16 %v164
      %v231 = vunpack.c.l.b16 %v165
      %v232 = vunpack.c.l.b16 %v166
      %v233 = vunpack.c.l.b16 %v167
      %v234 = vunpack.c.l.b16 %v168
      %v235 = vunpack.c.l.b16 %v169
      %v236 = vunpack.c.l.b16 %v170
      %v237 = vunpack.c.l.b16 %v171
      %v238 = vunpack.c.l.b16 %v172
      %v239 = vunpack.c.l.b16 %v173
      %v240 = vunpack.c.l.b16 %v174
      %v241 = vunpack.c.l.b16 %v175
      %v242 = vunpack.c.l.b16 %v176
      %v243 = vunpack.c.l.b16 %v177
      %v244 = vunpack.c.l.b16 %v178
      %v245 = vunpack.c.l.b16 %v179
      %v246 = vpack.c.b16 %v215, %v214
      %v247 = vpack.c.b16 %v217, %v216
      %v248 = vpack.c.b16 %v219, %v218
      %v249 = vpack.c.b16 %v221, %v220
      %v250 = vpack.c.b16 %v223, %v222
      %v251 = vpack.c.b16 %v225, %v224
      %v252 = vpack.c.b16 %v227, %v226
      %v253 = vpack.c.b16 %v229, %v228
      %v254 = vpack.c.b16 %v231, %v230
      %v255 = vpack.c.b16 %v233, %v232
      %v256 = vpack.c.b16 %v235, %v234
      %v257 = vpack.c.b16 %v237, %v236
      %v258 = vpack.c.b16 %v239, %v238
      %v259 = vpack.c.b16 %v241, %v240
      %v260 = vpack.c.b16 %v243, %v242
      %v261 = vpack.c.b16 %v245, %v244
      %v264 = vunpack.c.l.b16 %v180
      %v265 = vunpack.c.l.b16 %v181
      %v266 = vpack.c.b16 %v265, %v264
      %vm268 = vcmask 130048
      %v270 = vsel %vm268, %v246, 0
      %v273 = vsel %vm268, %v247, 0
      %v276 = vsel %vm268, %v248, 0
      %v279 = vsel %vm268, %v249, 0
      %v282 = vsel %vm268, %v250, 0
      %v285 = vsel %vm268, %v251, 0
      %v288 = vsel %vm268, %v252, 0
      %v291 = vsel %vm268, %v253, 0
      %v294 = vsel %vm268, %v254, 0
      %v297 = vsel %vm268, %v255, 0
      %v300 = vsel %vm268, %v256, 0
      %v303 = vsel %vm268, %v257, 0
      %v306 = vsel %vm268, %v258, 0
      %v309 = vsel %vm268, %v259, 0
      %v312 = vsel %vm268, %v260, 0
      %v315 = vsel %vm268, %v261, 0
      %317 = vmatpush.bf16.msra.mxu0 0
      %318 = vmatpush.bf16.msra.mxu0 0
      %319 = vmatpush.bf16.msra.mxu0 0
      %320 = vmatpush.bf16.msra.mxu0 0
      %321 = vmatpush.bf16.msra.mxu0 0
      %322 = vmatpush.bf16.msra.mxu0 0
      %323 = vmatpush.bf16.msra.mxu0 0
      %324 = vmatpush.bf16.msra.mxu0 %v266
      %325 = vmatmul.bf16.gmra.mxu0 %v270
      %v326 = vpop.f32.mrf.mxu0
      %v327 = vadd.f32 0.0, %v326
      %v328 = vpop.f32.mrf.mxu0
      %v329 = vadd.f32 0.0, %v328
      %330 = vmatmul.bf16.gmra.mxu0 %v273
      %v331 = vpop.f32.mrf.mxu0
      %v332 = vadd.f32 0.0, %v331
      %v333 = vpop.f32.mrf.mxu0
      %v334 = vadd.f32 0.0, %v333
      %335 = vmatmul.bf16.gmra.mxu0 %v276
      %v336 = vpop.f32.mrf.mxu0
      %v337 = vadd.f32 0.0, %v336
      %v338 = vpop.f32.mrf.mxu0
      %v339 = vadd.f32 0.0, %v338
      %340 = vmatmul.bf16.gmra.mxu0 %v279
      %v341 = vpop.f32.mrf.mxu0
      %v342 = vadd.f32 0.0, %v341
      %v343 = vpop.f32.mrf.mxu0
      %v344 = vadd.f32 0.0, %v343
      %345 = vmatmul.bf16.gmra.mxu0 %v282
      %v346 = vpop.f32.mrf.mxu0
      %v347 = vadd.f32 0.0, %v346
      %v348 = vpop.f32.mrf.mxu0
      %v349 = vadd.f32 0.0, %v348
      %350 = vmatmul.bf16.gmra.mxu0 %v285
      %v351 = vpop.f32.mrf.mxu0
      %v352 = vadd.f32 0.0, %v351
      %v353 = vpop.f32.mrf.mxu0
      %v354 = vadd.f32 0.0, %v353
      %355 = vmatmul.bf16.gmra.mxu0 %v288
      %v356 = vpop.f32.mrf.mxu0
      %v357 = vadd.f32 0.0, %v356
      %v358 = vpop.f32.mrf.mxu0
      %v359 = vadd.f32 0.0, %v358
      %360 = vmatmul.bf16.gmra.mxu0 %v291
      %v361 = vpop.f32.mrf.mxu0
      %v362 = vadd.f32 0.0, %v361
      %v363 = vpop.f32.mrf.mxu0
      %v364 = vadd.f32 0.0, %v363
      %365 = vmatmul.bf16.gmra.mxu0 %v294
      %v366 = vpop.f32.mrf.mxu0
      %v367 = vadd.f32 0.0, %v366
      %v368 = vpop.f32.mrf.mxu0
      %v369 = vadd.f32 0.0, %v368
      %370 = vmatmul.bf16.gmra.mxu0 %v297
      %v371 = vpop.f32.mrf.mxu0
      %v372 = vadd.f32 0.0, %v371
      %v373 = vpop.f32.mrf.mxu0
      %v374 = vadd.f32 0.0, %v373
      %375 = vmatmul.bf16.gmra.mxu0 %v300
      %v376 = vpop.f32.mrf.mxu0
      %v377 = vadd.f32 0.0, %v376
      %v378 = vpop.f32.mrf.mxu0
      %v379 = vadd.f32 0.0, %v378
      %380 = vmatmul.bf16.gmra.mxu0 %v303
      %v381 = vpop.f32.mrf.mxu0
      %v382 = vadd.f32 0.0, %v381
      %v383 = vpop.f32.mrf.mxu0
      %v384 = vadd.f32 0.0, %v383
      %385 = vmatmul.bf16.gmra.mxu0 %v306
      %v386 = vpop.f32.mrf.mxu0
      %v387 = vadd.f32 0.0, %v386
      %v388 = vpop.f32.mrf.mxu0
      %v389 = vadd.f32 0.0, %v388
      %390 = vmatmul.bf16.gmra.mxu0 %v309
      %v391 = vpop.f32.mrf.mxu0
      %v392 = vadd.f32 0.0, %v391
      %v393 = vpop.f32.mrf.mxu0
      %v394 = vadd.f32 0.0, %v393
      %395 = vmatmul.bf16.gmra.mxu0 %v312
      %v396 = vpop.f32.mrf.mxu0
      %v397 = vadd.f32 0.0, %v396
      %v398 = vpop.f32.mrf.mxu0
      %v399 = vadd.f32 0.0, %v398
      %400 = vmatmul.bf16.gmra.mxu0 %v315
      %v401 = vpop.f32.mrf.mxu0
      %v402 = vadd.f32 0.0, %v401
      %v403 = vpop.f32.mrf.mxu0
      %v404 = vadd.f32 0.0, %v403
      %405 = vdwg.mxu0
      %406 = vst [vmem:[%s145] sm:$0xff] %v327
      %407 = vst [vmem:[%s145 + $0x8] sm:$0xff] %v329
      %408 = vst [vmem:[%s145 + $0x10] sm:$0xff] %v332
      %409 = vst [vmem:[%s145 + $0x18] sm:$0xff] %v334
      %410 = vst [vmem:[%s145 + $0x20] sm:$0xff] %v337
      %411 = vst [vmem:[%s145 + $0x28] sm:$0xff] %v339
      %412 = vst [vmem:[%s145 + $0x30] sm:$0xff] %v342
      %413 = vst [vmem:[%s145 + $0x38] sm:$0xff] %v344
      %414 = vst [vmem:[%s145 + $0x40] sm:$0xff] %v347
      %415 = vst [vmem:[%s145 + $0x48] sm:$0xff] %v349
      %416 = vst [vmem:[%s145 + $0x50] sm:$0xff] %v352
      %417 = vst [vmem:[%s145 + $0x58] sm:$0xff] %v354
      %418 = vst [vmem:[%s145 + $0x60] sm:$0xff] %v357
      %419 = vst [vmem:[%s145 + $0x68] sm:$0xff] %v359
      %420 = vst [vmem:[%s145 + $0x70] sm:$0xff] %v362
      %421 = vst [vmem:[%s145 + $0x78] sm:$0xff] %v364
      %422 = vst [vmem:[%s145 + $0x80] sm:$0xff] %v367
      %423 = vst [vmem:[%s145 + $0x88] sm:$0xff] %v369
      %424 = vst [vmem:[%s145 + $0x90] sm:$0xff] %v372
      %425 = vst [vmem:[%s145 + $0x98] sm:$0xff] %v374
      %426 = vst [vmem:[%s145 + $0xa0] sm:$0xff] %v377
      %427 = vst [vmem:[%s145 + $0xa8] sm:$0xff] %v379
      %428 = vst [vmem:[%s145 + $0xb0] sm:$0xff] %v382
      %429 = vst [vmem:[%s145 + $0xb8] sm:$0xff] %v384
      %430 = vst [vmem:[%s145 + $0xc0] sm:$0xff] %v387
      %431 = vst [vmem:[%s145 + $0xc8] sm:$0xff] %v389
      %432 = vst [vmem:[%s145 + $0xd0] sm:$0xff] %v392
      %433 = vst [vmem:[%s145 + $0xd8] sm:$0xff] %v394
      %434 = vst [vmem:[%s145 + $0xe0] sm:$0xff] %v397
      %435 = vst [vmem:[%s145 + $0xe8] sm:$0xff] %v399
      %436 = vst [vmem:[%s145 + $0xf0] sm:$0xff] %v402
      %437 = vst [vmem:[%s145 + $0xf8] sm:$0xff] %v404
      %s438 = smul.u32 32, %s13
      %p439 = scmp.lt.s32.totalorder %s438, 63
      %s440 = scalar_select %p439, %s438, 63
      %s441 = smul.addr %s440, 8
      %s442 = scalar_lea.vmem %s2, %s441
      // Predicated region
      $region29: #{netG_forward.8} parent=27 // pred_check
        %p443 = pneg %p78
      $region30: #{netG_forward.8} parent=27 // pred_check_branch
        %445 = sbr.rel (%p443) target = $region32
      $region31: #{netG_forward.8} parent=27 // pred_region
        %s446 = smul.u32 32, %s13
      $region32: #{netG_forward.8} parent=27 // pred_fallthru
        _
    $region28: #{netG_forward.8} parent=5 // pred_fallthru
      _
    %p447 = scmp.le.s32.totalorder 2, %s8
    // Predicated region
    $region33: #{netG_forward.8} parent=5 // pred_check
      %p448 = pneg %p447
    $region34: #{netG_forward.8} parent=5 // pred_check_branch
      %450 = sbr.rel (%p448) target = $region36
    $region35: #{netG_forward.8} parent=5 // pred_region
      %s451 = ssub.s32 %s8, 2
      // Predicated region
      $region37: #{netG_forward.8} parent=35 // pred_check
        %p452 = pneg %p84
      $region38: #{netG_forward.8} parent=35 // pred_check_branch
        %454 = sbr.rel (%p452) target = $region40
      $region39: #{netG_forward.8} parent=35 // pred_region
        %s455 = smul.u32 32, %s14
        %p456 = scmp.lt.s32.totalorder %s455, 63
        %s457 = scalar_select %p456, %s455, 63
        %s458 = smul.addr %s457, 8
        %s459 = scalar_lea.vmem %s2, %s458
      $region40: #{netG_forward.8} parent=35 // pred_fallthru
        _
    $region36: #{netG_forward.8} parent=5 // pred_fallthru
      _
  $region6: #{netG_forward.8} parent=0 // loop_footer
    %s12 = sadd.s32 1, %s8
  $region7: #{netG_forward.8} parent=0 // loop_footer_branch
    %7 = sbr.rel target = $region3
  $region8: #{netG_forward.8} parent=0 // loop_exit
    _

// kernel: netG_forward.9
$region0: #{netG_forward.9}
  #allocation0 [shape = 'u32[]', space=smem, size = 0x4, offset = 0x4, fixed_abs, tag = 'smem constant byte address 0x4 - core index']
  #allocation1 [shape = 'u32[72,128]{1,0:T(1,128)}', space=vmem, size = 0x9000, scoped, tag = 'internal scratch']
  %s0 = inlined_call_operand.vmem [shape: bf16[2048,8], index: 0, kind: input, shape index: {}]
  %s1 = inlined_call_operand.vmem [shape: bf16[8,128], index: 1, kind: input, shape index: {}]
  %s2 = inlined_call_operand.vmem [shape: f32[2048,128], index: 2, kind: output, shape index: {}]
  %s3 = sld [smem:[#allocation0]]
  $region41: #{netG_forward.9} parent=0
    _
  %s5 = ssub.s32 1, %s3
  %s6 = scalar_select 0, %s5, %s3
  loop: start=0, step=1, limit=4
  $region2: #{netG_forward.9} parent=0 // loop_pre_header
    _
  $region3: #{netG_forward.9} parent=0 // loop_header
    %s8 = sphi 0, %s12
    %p9 = scmp.ge.s32.totalorder %s8, 4
    %s18 = sphi 0, %s20
    %s21 = sphi 0, %s18
    %s22 = sphi 0, %s21
    %s38 = sphi 0, %s22
    %s42 = sphi 0, %s42
    %s44 = sphi 0, %s42
    %s45 = sphi 0, %s44
    %s59 = sphi 0, %s45
    %s65 = sphi 0, %s67
    %s68 = sphi 0, %s65
    %s69 = sphi 0, %s68
    %s85 = sphi 0, %s69
  $region4: #{netG_forward.9} parent=0 // loop_header_branch
    %11 = sbr.rel (%p9) target = $region8
  $region5: #{netG_forward.9} parent=0 // loop_body
    %s13 = ssub.s32 %s8, 1
    %s14 = ssub.s32 %s8, 2
    %s15 = sadd.s32 %s8, 1
    %s16 = ssub.s32 %s8, %s15
    %p17 = scmp.eq.s32.totalorder %s16, 0
    %s19 = sadd.s32 %s18, 1
    %s20 = scalar_select %p17, %s18, %s19
    %p23 = pneg %p17
    %p24 = scmp.eq.s32.totalorder %s8, 1
    %p25 = por %p23, %p24
    %p26 = scmp.ne.s32.totalorder %s18, %s21
    %p27 = scmp.eq.s32.totalorder %s8, 0
    %p28 = por %p26, %p27
    %p29 = scmp.ne.s32.totalorder %s18, %s21
    %p30 = scmp.eq.s32.totalorder %s13, 1
    %p31 = por %p29, %p30
    %p32 = scmp.ne.s32.totalorder %s21, %s22
    %p33 = scmp.eq.s32.totalorder %s13, 0
    %p34 = por %p32, %p33
    %p35 = scmp.ne.s32.totalorder %s21, %s22
    %p36 = scmp.eq.s32.totalorder %s14, 1
    %p37 = por %p35, %p36
    %p39 = scmp.ne.s32.totalorder %s22, %s38
    %p40 = scmp.eq.s32.totalorder %s14, 0
    %p41 = por %p39, %p40
    %s43 = sadd.s32 %s42, 1
    %p46 = scmp.eq.s32.totalorder %s8, 1
    %p47 = scmp.ne.s32.totalorder %s42, %s44
    %p48 = scmp.eq.s32.totalorder %s8, 0
    %p49 = por %p47, %p48
    %p50 = scmp.ne.s32.totalorder %s42, %s44
    %p51 = scmp.eq.s32.totalorder %s13, 1
    %p52 = por %p50, %p51
    %p53 = scmp.ne.s32.totalorder %s44, %s45
    %p54 = scmp.eq.s32.totalorder %s13, 0
    %p55 = por %p53, %p54
    %p56 = scmp.ne.s32.totalorder %s44, %s45
    %p57 = scmp.eq.s32.totalorder %s14, 1
    %p58 = por %p56, %p57
    %p60 = scmp.ne.s32.totalorder %s45, %s59
    %p61 = scmp.eq.s32.totalorder %s14, 0
    %p62 = por %p60, %p61
    %s63 = ssub.s32 %s8, %s15
    %p64 = scmp.eq.s32.totalorder %s63, 0
    %s66 = sadd.s32 %s65, 1
    %s67 = scalar_select %p64, %s65, %s66
    %p70 = pneg %p64
    %p71 = scmp.eq.s32.totalorder %s8, 1
    %p72 = por %p70, %p71
    %p73 = scmp.ne.s32.totalorder %s65, %s68
    %p74 = scmp.eq.s32.totalorder %s8, 0
    %p75 = por %p73, %p74
    %p76 = scmp.ne.s32.totalorder %s65, %s68
    %p77 = scmp.eq.s32.totalorder %s13, 1
    %p78 = por %p76, %p77
    %p79 = scmp.ne.s32.totalorder %s68, %s69
    %p80 = scmp.eq.s32.totalorder %s13, 0
    %p81 = por %p79, %p80
    %p82 = scmp.ne.s32.totalorder %s68, %s69
    %p83 = scmp.eq.s32.totalorder %s14, 1
    %p84 = por %p82, %p83
    %p86 = scmp.ne.s32.totalorder %s69, %s85
    %p87 = scmp.eq.s32.totalorder %s14, 0
    %p88 = por %p86, %p87
    %p89 = scmp.le.s32.totalorder 1, %s8
    %p90 = scmp.lt.s32.totalorder %s8, 3
    %p91 = pnand %p89, %p90
    %p92 = pneg %p91
    // Predicated region
    $region9: #{netG_forward.9} parent=5 // pred_check
      _
    $region10: #{netG_forward.9} parent=5 // pred_check_branch
      %94 = sbr.rel (%p91) target = $region12
    $region11: #{netG_forward.9} parent=5 // pred_region
      %s95 = ssub.s32 %s8, 1
      // Predicated region
      $region13: #{netG_forward.9} parent=11 // pred_check
        %p96 = pneg %p55
      $region14: #{netG_forward.9} parent=11 // pred_check_branch
        %98 = sbr.rel (%p96) target = $region16
      $region15: #{netG_forward.9} parent=11 // pred_region
        _
      $region16: #{netG_forward.9} parent=11 // pred_fallthru
        _
    $region12: #{netG_forward.9} parent=5 // pred_fallthru
      _
    %p99 = scmp.lt.s32.totalorder %s8, 2
    // Predicated region
    $region17: #{netG_forward.9} parent=5 // pred_check
      %p100 = pneg %p99
    $region18: #{netG_forward.9} parent=5 // pred_check_branch
      %102 = sbr.rel (%p100) target = $region20
    $region19: #{netG_forward.9} parent=5 // pred_region
      // Predicated region
      $region21: #{netG_forward.9} parent=19 // pred_check
        %p103 = pneg %p28
      $region22: #{netG_forward.9} parent=19 // pred_check_branch
        %105 = sbr.rel (%p103) target = $region24
      $region23: #{netG_forward.9} parent=19 // pred_region
        %s106 = smul.u32 128, %s8
        %p107 = scmp.lt.s32.totalorder %s106, 255
        %s108 = scalar_select %p107, %s106, 255
        %s109 = smul.addr %s108, 4
        %s110 = scalar_lea.vmem %s0, %s109
        %s111 = smul.u32 128, %s8
      $region24: #{netG_forward.9} parent=19 // pred_fallthru
        _
    $region20: #{netG_forward.9} parent=5 // pred_fallthru
      _
    %p112 = scmp.le.s32.totalorder 1, %s8
    %p113 = scmp.lt.s32.totalorder %s8, 3
    %p114 = pnand %p112, %p113
    %p115 = pneg %p114
    // Predicated region
    $region25: #{netG_forward.9} parent=5 // pred_check
      _
    $region26: #{netG_forward.9} parent=5 // pred_check_branch
      %117 = sbr.rel (%p114) target = $region28
    $region27: #{netG_forward.9} parent=5 // pred_region
      %s118 = ssub.s32 %s8, 1
      %s119 = smul.u32 128, %s13
      %p120 = scmp.lt.s32.totalorder %s119, 255
      %s121 = scalar_select %p120, %s119, 255
      %s122 = smul.addr %s121, 4
      %s123 = scalar_lea.vmem %s0, %s122
      %p124 = pneg %p34
      %p125 = pneg %p31
      %p126 = pneg %p55
      %p127 = pneg %p52
      %p128 = pneg %p81
      %p129 = pneg %p78
      %s130 = smul.u32 128, %s13
      %p131 = scmp.lt.s32.totalorder %s130, 255
      %s132 = scalar_select %p131, %s130, 255
      %s133 = smul.addr %s132, 8
      %s134 = scalar_lea.vmem %s2, %s133
      %s135 = smul.u32 128, %s13
      %p136 = scmp.lt.s32.totalorder %s135, 255
      %s137 = scalar_select %p136, %s135, 255
      %s138 = smul.addr %s137, 4
      %s139 = scalar_lea.vmem %s0, %s138
      %s140 = smul.u32 128, %s13
      %s141 = smul.u32 128, %s13
      %p142 = scmp.lt.s32.totalorder %s141, 255
      %s143 = scalar_select %p142, %s141, 255
      %s144 = smul.addr %s143, 8
      %s145 = scalar_lea.vmem %s2, %s144
      %s146 = smul.u32 128, %s13
      %v148 = vld [vmem:[%s139] sm:$0xf]
      %v149 = vld [vmem:[%s139 + $0x4] sm:$0xf]
      %v150 = vld [vmem:[%s139 + $0x8] sm:$0xf]
      %v151 = vld [vmem:[%s139 + $0xc] sm:$0xf]
      %v152 = vld [vmem:[%s139 + $0x10] sm:$0xf]
      %v153 = vld [vmem:[%s139 + $0x14] sm:$0xf]
      %v154 = vld [vmem:[%s139 + $0x18] sm:$0xf]
      %v155 = vld [vmem:[%s139 + $0x1c] sm:$0xf]
      %v156 = vld [vmem:[%s139 + $0x20] sm:$0xf]
      %v157 = vld [vmem:[%s139 + $0x24] sm:$0xf]
      %v158 = vld [vmem:[%s139 + $0x28] sm:$0xf]
      %v159 = vld [vmem:[%s139 + $0x2c] sm:$0xf]
      %v160 = vld [vmem:[%s139 + $0x30] sm:$0xf]
      %v161 = vld [vmem:[%s139 + $0x34] sm:$0xf]
      %v162 = vld [vmem:[%s139 + $0x38] sm:$0xf]
      %v163 = vld [vmem:[%s139 + $0x3c] sm:$0xf]
      %v164 = vld [vmem:[%s139 + $0x40] sm:$0xf]
      %v165 = vld [vmem:[%s139 + $0x44] sm:$0xf]
      %v166 = vld [vmem:[%s139 + $0x48] sm:$0xf]
      %v167 = vld [vmem:[%s139 + $0x4c] sm:$0xf]
      %v168 = vld [vmem:[%s139 + $0x50] sm:$0xf]
      %v169 = vld [vmem:[%s139 + $0x54] sm:$0xf]
      %v170 = vld [vmem:[%s139 + $0x58] sm:$0xf]
      %v171 = vld [vmem:[%s139 + $0x5c] sm:$0xf]
      %v172 = vld [vmem:[%s139 + $0x60] sm:$0xf]
      %v173 = vld [vmem:[%s139 + $0x64] sm:$0xf]
      %v174 = vld [vmem:[%s139 + $0x68] sm:$0xf]
      %v175 = vld [vmem:[%s139 + $0x6c] sm:$0xf]
      %v176 = vld [vmem:[%s139 + $0x70] sm:$0xf]
      %v177 = vld [vmem:[%s139 + $0x74] sm:$0xf]
      %v178 = vld [vmem:[%s139 + $0x78] sm:$0xf]
      %v179 = vld [vmem:[%s139 + $0x7c] sm:$0xf]
      %v180 = vld [vmem:[%s139 + $0x80] sm:$0xf]
      %v181 = vld [vmem:[%s139 + $0x84] sm:$0xf]
      %v182 = vld [vmem:[%s139 + $0x88] sm:$0xf]
      %v183 = vld [vmem:[%s139 + $0x8c] sm:$0xf]
      %v184 = vld [vmem:[%s139 + $0x90] sm:$0xf]
      %v185 = vld [vmem:[%s139 + $0x94] sm:$0xf]
      %v186 = vld [vmem:[%s139 + $0x98] sm:$0xf]
      %v187 = vld [vmem:[%s139 + $0x9c] sm:$0xf]
      %v188 = vld [vmem:[%s139 + $0xa0] sm:$0xf]
      %v189 = vld [vmem:[%s139 + $0xa4] sm:$0xf]
      %v190 = vld [vmem:[%s139 + $0xa8] sm:$0xf]
      %v191 = vld [vmem:[%s139 + $0xac] sm:$0xf]
      %v192 = vld [vmem:[%s139 + $0xb0] sm:$0xf]
      %v193 = vld [vmem:[%s139 + $0xb4] sm:$0xf]
      %v194 = vld [vmem:[%s139 + $0xb8] sm:$0xf]
      %v195 = vld [vmem:[%s139 + $0xbc] sm:$0xf]
      %v196 = vld [vmem:[%s139 + $0xc0] sm:$0xf]
      %v197 = vld [vmem:[%s139 + $0xc4] sm:$0xf]
      %v198 = vld [vmem:[%s139 + $0xc8] sm:$0xf]
      %v199 = vld [vmem:[%s139 + $0xcc] sm:$0xf]
      %v200 = vld [vmem:[%s139 + $0xd0] sm:$0xf]
      %v201 = vld [vmem:[%s139 + $0xd4] sm:$0xf]
      %v202 = vld [vmem:[%s139 + $0xd8] sm:$0xf]
      %v203 = vld [vmem:[%s139 + $0xdc] sm:$0xf]
      %v204 = vld [vmem:[%s139 + $0xe0] sm:$0xf]
      %v205 = vld [vmem:[%s139 + $0xe4] sm:$0xf]
      %v206 = vld [vmem:[%s139 + $0xe8] sm:$0xf]
      %v207 = vld [vmem:[%s139 + $0xec] sm:$0xf]
      %v208 = vld [vmem:[%s139 + $0xf0] sm:$0xf]
      %v209 = vld [vmem:[%s139 + $0xf4] sm:$0xf]
      %v210 = vld [vmem:[%s139 + $0xf8] sm:$0xf]
      %v211 = vld [vmem:[%s139 + $0xfc] sm:$0xf]
      %v212 = vld [vmem:[%s139 + $0x100] sm:$0xf]
      %v213 = vld [vmem:[%s139 + $0x104] sm:$0xf]
      %v214 = vld [vmem:[%s139 + $0x108] sm:$0xf]
      %v215 = vld [vmem:[%s139 + $0x10c] sm:$0xf]
      %v216 = vld [vmem:[%s139 + $0x110] sm:$0xf]
      %v217 = vld [vmem:[%s139 + $0x114] sm:$0xf]
      %v218 = vld [vmem:[%s139 + $0x118] sm:$0xf]
      %v219 = vld [vmem:[%s139 + $0x11c] sm:$0xf]
      %v220 = vld [vmem:[%s139 + $0x120] sm:$0xf]
      %v221 = vld [vmem:[%s139 + $0x124] sm:$0xf]
      %v222 = vld [vmem:[%s139 + $0x128] sm:$0xf]
      %v223 = vld [vmem:[%s139 + $0x12c] sm:$0xf]
      %v224 = vld [vmem:[%s139 + $0x130] sm:$0xf]
      %v225 = vld [vmem:[%s139 + $0x134] sm:$0xf]
      %v226 = vld [vmem:[%s139 + $0x138] sm:$0xf]
      %v227 = vld [vmem:[%s139 + $0x13c] sm:$0xf]
      %v228 = vld [vmem:[%s139 + $0x140] sm:$0xf]
      %v229 = vld [vmem:[%s139 + $0x144] sm:$0xf]
      %v230 = vld [vmem:[%s139 + $0x148] sm:$0xf]
      %v231 = vld [vmem:[%s139 + $0x14c] sm:$0xf]
      %v232 = vld [vmem:[%s139 + $0x150] sm:$0xf]
      %v233 = vld [vmem:[%s139 + $0x154] sm:$0xf]
      %v234 = vld [vmem:[%s139 + $0x158] sm:$0xf]
      %v235 = vld [vmem:[%s139 + $0x15c] sm:$0xf]
      %v236 = vld [vmem:[%s139 + $0x160] sm:$0xf]
      %v237 = vld [vmem:[%s139 + $0x164] sm:$0xf]
      %v238 = vld [vmem:[%s139 + $0x168] sm:$0xf]
      %v239 = vld [vmem:[%s139 + $0x16c] sm:$0xf]
      %v240 = vld [vmem:[%s139 + $0x170] sm:$0xf]
      %v241 = vld [vmem:[%s139 + $0x174] sm:$0xf]
      %v242 = vld [vmem:[%s139 + $0x178] sm:$0xf]
      %v243 = vld [vmem:[%s139 + $0x17c] sm:$0xf]
      %v244 = vld [vmem:[%s139 + $0x180] sm:$0xf]
      %v245 = vld [vmem:[%s139 + $0x184] sm:$0xf]
      %v246 = vld [vmem:[%s139 + $0x188] sm:$0xf]
      %v247 = vld [vmem:[%s139 + $0x18c] sm:$0xf]
      %v248 = vld [vmem:[%s139 + $0x190] sm:$0xf]
      %v249 = vld [vmem:[%s139 + $0x194] sm:$0xf]
      %v250 = vld [vmem:[%s139 + $0x198] sm:$0xf]
      %v251 = vld [vmem:[%s139 + $0x19c] sm:$0xf]
      %v252 = vld [vmem:[%s139 + $0x1a0] sm:$0xf]
      %v253 = vld [vmem:[%s139 + $0x1a4] sm:$0xf]
      %v254 = vld [vmem:[%s139 + $0x1a8] sm:$0xf]
      %v255 = vld [vmem:[%s139 + $0x1ac] sm:$0xf]
      %v256 = vld [vmem:[%s139 + $0x1b0] sm:$0xf]
      %v257 = vld [vmem:[%s139 + $0x1b4] sm:$0xf]
      %v258 = vld [vmem:[%s139 + $0x1b8] sm:$0xf]
      %v259 = vld [vmem:[%s139 + $0x1bc] sm:$0xf]
      %v260 = vld [vmem:[%s139 + $0x1c0] sm:$0xf]
      %v261 = vld [vmem:[%s139 + $0x1c4] sm:$0xf]
      %v262 = vld [vmem:[%s139 + $0x1c8] sm:$0xf]
      %v263 = vld [vmem:[%s139 + $0x1cc] sm:$0xf]
      %v264 = vld [vmem:[%s139 + $0x1d0] sm:$0xf]
      %v265 = vld [vmem:[%s139 + $0x1d4] sm:$0xf]
      %v266 = vld [vmem:[%s139 + $0x1d8] sm:$0xf]
      %v267 = vld [vmem:[%s139 + $0x1dc] sm:$0xf]
      %v268 = vld [vmem:[%s139 + $0x1e0] sm:$0xf]
      %v269 = vld [vmem:[%s139 + $0x1e4] sm:$0xf]
      %v270 = vld [vmem:[%s139 + $0x1e8] sm:$0xf]
      %v271 = vld [vmem:[%s139 + $0x1ec] sm:$0xf]
      %v272 = vld [vmem:[%s139 + $0x1f0] sm:$0xf]
      %v273 = vld [vmem:[%s139 + $0x1f4] sm:$0xf]
      %v274 = vld [vmem:[%s139 + $0x1f8] sm:$0xf]
      %v275 = vld [vmem:[%s139 + $0x1fc] sm:$0xf]
      %v276 = vld [vmem:[%s1] sm:$0xf]
      %v405 = vunpack.c.l.b16 %v148
      %v406 = vunpack.c.l.b16 %v149
      %v407 = vunpack.c.l.b16 %v150
      %v408 = vunpack.c.l.b16 %v151
      %v409 = vunpack.c.l.b16 %v152
      %v410 = vunpack.c.l.b16 %v153
      %v411 = vunpack.c.l.b16 %v154
      %v412 = vunpack.c.l.b16 %v155
      %v413 = vunpack.c.l.b16 %v156
      %v414 = vunpack.c.l.b16 %v157
      %v415 = vunpack.c.l.b16 %v158
      %v416 = vunpack.c.l.b16 %v159
      %v417 = vunpack.c.l.b16 %v160
      %v418 = vunpack.c.l.b16 %v161
      %v419 = vunpack.c.l.b16 %v162
      %v420 = vunpack.c.l.b16 %v163
      %v421 = vunpack.c.l.b16 %v164
      %v422 = vunpack.c.l.b16 %v165
      %v423 = vunpack.c.l.b16 %v166
      %v424 = vunpack.c.l.b16 %v167
      %v425 = vunpack.c.l.b16 %v168
      %v426 = vunpack.c.l.b16 %v169
      %v427 = vunpack.c.l.b16 %v170
      %v428 = vunpack.c.l.b16 %v171
      %v429 = vunpack.c.l.b16 %v172
      %v430 = vunpack.c.l.b16 %v173
      %v431 = vunpack.c.l.b16 %v174
      %v432 = vunpack.c.l.b16 %v175
      %v433 = vunpack.c.l.b16 %v176
      %v434 = vunpack.c.l.b16 %v177
      %v435 = vunpack.c.l.b16 %v178
      %v436 = vunpack.c.l.b16 %v179
      %v437 = vunpack.c.l.b16 %v180
      %v438 = vunpack.c.l.b16 %v181
      %v439 = vunpack.c.l.b16 %v182
      %v440 = vunpack.c.l.b16 %v183
      %v441 = vunpack.c.l.b16 %v184
      %v442 = vunpack.c.l.b16 %v185
      %v443 = vunpack.c.l.b16 %v186
      %v444 = vunpack.c.l.b16 %v187
      %v445 = vunpack.c.l.b16 %v188
      %v446 = vunpack.c.l.b16 %v189
      %v447 = vunpack.c.l.b16 %v190
      %v448 = vunpack.c.l.b16 %v191
      %v449 = vunpack.c.l.b16 %v192
      %v450 = vunpack.c.l.b16 %v193
      %v451 = vunpack.c.l.b16 %v194
      %v452 = vunpack.c.l.b16 %v195
      %v453 = vunpack.c.l.b16 %v196
      %v454 = vunpack.c.l.b16 %v197
      %v455 = vunpack.c.l.b16 %v198
      %v456 = vunpack.c.l.b16 %v199
      %v457 = vunpack.c.l.b16 %v200
      %v458 = vunpack.c.l.b16 %v201
      %v459 = vunpack.c.l.b16 %v202
      %v460 = vunpack.c.l.b16 %v203
      %v461 = vunpack.c.l.b16 %v204
      %v462 = vunpack.c.l.b16 %v205
      %v463 = vunpack.c.l.b16 %v206
      %v464 = vunpack.c.l.b16 %v207
      %v465 = vunpack.c.l.b16 %v208
      %v466 = vunpack.c.l.b16 %v209
      %v467 = vunpack.c.l.b16 %v210
      %v468 = vunpack.c.l.b16 %v211
      %v469 = vunpack.c.l.b16 %v212
      %v470 = vunpack.c.l.b16 %v213
      %v471 = vunpack.c.l.b16 %v214
      %v472 = vunpack.c.l.b16 %v215
      %v473 = vunpack.c.l.b16 %v216
      %v474 = vunpack.c.l.b16 %v217
      %v475 = vunpack.c.l.b16 %v218
      %v476 = vunpack.c.l.b16 %v219
      %v477 = vunpack.c.l.b16 %v220
      %v478 = vunpack.c.l.b16 %v221
      %v479 = vunpack.c.l.b16 %v222
      %v480 = vunpack.c.l.b16 %v223
      %v481 = vunpack.c.l.b16 %v224
      %v482 = vunpack.c.l.b16 %v225
      %v483 = vunpack.c.l.b16 %v226
      %v484 = vunpack.c.l.b16 %v227
      %v485 = vunpack.c.l.b16 %v228
      %v486 = vunpack.c.l.b16 %v229
      %v487 = vunpack.c.l.b16 %v230
      %v488 = vunpack.c.l.b16 %v231
      %v489 = vunpack.c.l.b16 %v232
      %v490 = vunpack.c.l.b16 %v233
      %v491 = vunpack.c.l.b16 %v234
      %v492 = vunpack.c.l.b16 %v235
      %v493 = vunpack.c.l.b16 %v236
      %v494 = vunpack.c.l.b16 %v237
      %v495 = vunpack.c.l.b16 %v238
      %v496 = vunpack.c.l.b16 %v239
      %v497 = vunpack.c.l.b16 %v240
      %v498 = vunpack.c.l.b16 %v241
      %v499 = vunpack.c.l.b16 %v242
      %v500 = vunpack.c.l.b16 %v243
      %v501 = vunpack.c.l.b16 %v244
      %v502 = vunpack.c.l.b16 %v245
      %v503 = vunpack.c.l.b16 %v246
      %v504 = vunpack.c.l.b16 %v247
      %v505 = vunpack.c.l.b16 %v248
      %v506 = vunpack.c.l.b16 %v249
      %v507 = vunpack.c.l.b16 %v250
      %v508 = vunpack.c.l.b16 %v251
      %v509 = vunpack.c.l.b16 %v252
      %v510 = vunpack.c.l.b16 %v253
      %v511 = vunpack.c.l.b16 %v254
      %v512 = vunpack.c.l.b16 %v255
      %v513 = vunpack.c.l.b16 %v256
      %v514 = vunpack.c.l.b16 %v257
      %v515 = vunpack.c.l.b16 %v258
      %v516 = vunpack.c.l.b16 %v259
      %v517 = vunpack.c.l.b16 %v260
      %v518 = vunpack.c.l.b16 %v261
      %v519 = vunpack.c.l.b16 %v262
      %v520 = vunpack.c.l.b16 %v263
      %v521 = vunpack.c.l.b16 %v264
      %v522 = vunpack.c.l.b16 %v265
      %v523 = vunpack.c.l.b16 %v266
      %v524 = vunpack.c.l.b16 %v267
      %v525 = vunpack.c.l.b16 %v268
      %v526 = vunpack.c.l.b16 %v269
      %v527 = vunpack.c.l.b16 %v270
      %v528 = vunpack.c.l.b16 %v271
      %v529 = vunpack.c.l.b16 %v272
      %v530 = vunpack.c.l.b16 %v273
      %v531 = vunpack.c.l.b16 %v274
      %v532 = vunpack.c.l.b16 %v275
      %v533 = vpack.c.b16 %v406, %v405
      %v534 = vpack.c.b16 %v408, %v407
      %v535 = vpack.c.b16 %v410, %v409
      %v536 = vpack.c.b16 %v412, %v411
      %v537 = vpack.c.b16 %v414, %v413
      %v538 = vpack.c.b16 %v416, %v415
      %v539 = vpack.c.b16 %v418, %v417
      %v540 = vpack.c.b16 %v420, %v419
      %v541 = vpack.c.b16 %v422, %v421
      %v542 = vpack.c.b16 %v424, %v423
      %v543 = vpack.c.b16 %v426, %v425
      %v544 = vpack.c.b16 %v428, %v427
      %v545 = vpack.c.b16 %v430, %v429
      %v546 = vpack.c.b16 %v432, %v431
      %v547 = vpack.c.b16 %v434, %v433
      %v548 = vpack.c.b16 %v436, %v435
      %v549 = vpack.c.b16 %v438, %v437
      %v550 = vpack.c.b16 %v440, %v439
      %v551 = vpack.c.b16 %v442, %v441
      %v552 = vpack.c.b16 %v444, %v443
      %v553 = vpack.c.b16 %v446, %v445
      %v554 = vpack.c.b16 %v448, %v447
      %v555 = vpack.c.b16 %v450, %v449
      %v556 = vpack.c.b16 %v452, %v451
      %v557 = vpack.c.b16 %v454, %v453
      %v558 = vpack.c.b16 %v456, %v455
      %v559 = vpack.c.b16 %v458, %v457
      %v560 = vpack.c.b16 %v460, %v459
      %v561 = vpack.c.b16 %v462, %v461
      %v562 = vpack.c.b16 %v464, %v463
      %v563 = vpack.c.b16 %v466, %v465
      %v564 = vpack.c.b16 %v468, %v467
      %v565 = vpack.c.b16 %v470, %v469
      %v566 = vpack.c.b16 %v472, %v471
      %v567 = vpack.c.b16 %v474, %v473
      %v568 = vpack.c.b16 %v476, %v475
      %v569 = vpack.c.b16 %v478, %v477
      %v570 = vpack.c.b16 %v480, %v479
      %v571 = vpack.c.b16 %v482, %v481
      %v572 = vpack.c.b16 %v484, %v483
      %v573 = vpack.c.b16 %v486, %v485
      %v574 = vpack.c.b16 %v488, %v487
      %v575 = vpack.c.b16 %v490, %v489
      %v576 = vpack.c.b16 %v492, %v491
      %v577 = vpack.c.b16 %v494, %v493
      %v578 = vpack.c.b16 %v496, %v495
      %v579 = vpack.c.b16 %v498, %v497
      %v580 = vpack.c.b16 %v500, %v499
      %v581 = vpack.c.b16 %v502, %v501
      %v582 = vpack.c.b16 %v504, %v503
      %v583 = vpack.c.b16 %v506, %v505
      %v584 = vpack.c.b16 %v508, %v507
      %v585 = vpack.c.b16 %v510, %v509
      %v586 = vpack.c.b16 %v512, %v511
      %v587 = vpack.c.b16 %v514, %v513
      %v588 = vpack.c.b16 %v516, %v515
      %v589 = vpack.c.b16 %v518, %v517
      %v590 = vpack.c.b16 %v520, %v519
      %v591 = vpack.c.b16 %v522, %v521
      %v592 = vpack.c.b16 %v524, %v523
      %v593 = vpack.c.b16 %v526, %v525
      %v594 = vpack.c.b16 %v528, %v527
      %v595 = vpack.c.b16 %v530, %v529
      %v596 = vpack.c.b16 %v532, %v531
      %vm597 = vcmask 64512
      %v599 = vsel %vm597, %v533, 0
      %v602 = vsel %vm597, %v534, 0
      %v605 = vsel %vm597, %v535, 0
      %v608 = vsel %vm597, %v536, 0
      %v611 = vsel %vm597, %v537, 0
      %v614 = vsel %vm597, %v538, 0
      %v617 = vsel %vm597, %v539, 0
      %v620 = vsel %vm597, %v540, 0
      %v623 = vsel %vm597, %v541, 0
      %v626 = vsel %vm597, %v542, 0
      %v629 = vsel %vm597, %v543, 0
      %v632 = vsel %vm597, %v544, 0
      %v635 = vsel %vm597, %v545, 0
      %v638 = vsel %vm597, %v546, 0
      %v641 = vsel %vm597, %v547, 0
      %v644 = vsel %vm597, %v548, 0
      %v647 = vsel %vm597, %v549, 0
      %v650 = vsel %vm597, %v550, 0
      %v653 = vsel %vm597, %v551, 0
      %v656 = vsel %vm597, %v552, 0
      %v659 = vsel %vm597, %v553, 0
      %v662 = vsel %vm597, %v554, 0
      %v665 = vsel %vm597, %v555, 0
      %v668 = vsel %vm597, %v556, 0
      %v671 = vsel %vm597, %v557, 0
      %v674 = vsel %vm597, %v558, 0
      %v677 = vsel %vm597, %v559, 0
      %v680 = vsel %vm597, %v560, 0
      %v683 = vsel %vm597, %v561, 0
      %v686 = vsel %vm597, %v562, 0
      %v689 = vsel %vm597, %v563, 0
      %v692 = vsel %vm597, %v564, 0
      %v695 = vsel %vm597, %v565, 0
      %v698 = vsel %vm597, %v566, 0
      %v701 = vsel %vm597, %v567, 0
      %v704 = vsel %vm597, %v568, 0
      %v707 = vsel %vm597, %v569, 0
      %v710 = vsel %vm597, %v570, 0
      %v713 = vsel %vm597, %v571, 0
      %v716 = vsel %vm597, %v572, 0
      %v719 = vsel %vm597, %v573, 0
      %v722 = vsel %vm597, %v574, 0
      %v725 = vsel %vm597, %v575, 0
      %v728 = vsel %vm597, %v576, 0
      %v731 = vsel %vm597, %v577, 0
      %v734 = vsel %vm597, %v578, 0
      %v737 = vsel %vm597, %v579, 0
      %v740 = vsel %vm597, %v580, 0
      %v743 = vsel %vm597, %v581, 0
      %v746 = vsel %vm597, %v582, 0
      %v749 = vsel %vm597, %v583, 0
      %v752 = vsel %vm597, %v584, 0
      %v755 = vsel %vm597, %v585, 0
      %v758 = vsel %vm597, %v586, 0
      %v761 = vsel %vm597, %v587, 0
      %v764 = vsel %vm597, %v588, 0
      %v767 = vsel %vm597, %v589, 0
      %v770 = vsel %vm597, %v590, 0
      %v773 = vsel %vm597, %v591, 0
      %v776 = vsel %vm597, %v592, 0
      %v779 = vsel %vm597, %v593, 0
      %v782 = vsel %vm597, %v594, 0
      %v785 = vsel %vm597, %v595, 0
      %v788 = vsel %vm597, %v596, 0
      %vm790 = vcmask 1043456
      %v792 = vsel %vm790, %v276, 0
      %794 = vmatpush.bf16.msra.mxu0 0
      %795 = vmatpush.bf16.msra.mxu0 0
      %796 = vmatpush.bf16.msra.mxu0 0
      %797 = vmatpush.bf16.msra.mxu0 0
      %798 = vmatpush.bf16.msra.mxu0 0
      %799 = vmatpush.bf16.msra.mxu0 0
      %800 = vmatpush.bf16.msra.mxu0 0
      %801 = vmatpush.bf16.msra.mxu0 %v792
      %802 = vmatmul.bf16.gmra.mxu0 %v599
      %v803 = vpop.f32.mrf.mxu0
      %v804 = vadd.f32 0.0, %v803
      %v805 = vpop.f32.mrf.mxu0
      %v806 = vadd.f32 0.0, %v805
      %807 = vmatmul.bf16.gmra.mxu0 %v602
      %v808 = vpop.f32.mrf.mxu0
      %v809 = vadd.f32 0.0, %v808
      %v810 = vpop.f32.mrf.mxu0
      %v811 = vadd.f32 0.0, %v810
      %812 = vmatmul.bf16.gmra.mxu0 %v605
      %v813 = vpop.f32.mrf.mxu0
      %v814 = vadd.f32 0.0, %v813
      %v815 = vpop.f32.mrf.mxu0
      %v816 = vadd.f32 0.0, %v815
      %817 = vmatmul.bf16.gmra.mxu0 %v608
      %v818 = vpop.f32.mrf.mxu0
      %v819 = vadd.f32 0.0, %v818
      %v820 = vpop.f32.mrf.mxu0
      %v821 = vadd.f32 0.0, %v820
      %822 = vmatmul.bf16.gmra.mxu0 %v611
      %v823 = vpop.f32.mrf.mxu0
      %v824 = vadd.f32 0.0, %v823
      %v825 = vpop.f32.mrf.mxu0
      %v826 = vadd.f32 0.0, %v825
      %827 = vmatmul.bf16.gmra.mxu0 %v614
      %v828 = vpop.f32.mrf.mxu0
      %v829 = vadd.f32 0.0, %v828
      %v830 = vpop.f32.mrf.mxu0
      %v831 = vadd.f32 0.0, %v830
      %832 = vmatmul.bf16.gmra.mxu0 %v617
      %v833 = vpop.f32.mrf.mxu0
      %v834 = vadd.f32 0.0, %v833
      %v835 = vpop.f32.mrf.mxu0
      %v836 = vadd.f32 0.0, %v835
      %837 = vmatmul.bf16.gmra.mxu0 %v620
      %v838 = vpop.f32.mrf.mxu0
      %v839 = vadd.f32 0.0, %v838
      %v840 = vpop.f32.mrf.mxu0
      %v841 = vadd.f32 0.0, %v840
      %842 = vmatmul.bf16.gmra.mxu0 %v623
      %v843 = vpop.f32.mrf.mxu0
      %v844 = vadd.f32 0.0, %v843
      %v845 = vpop.f32.mrf.mxu0
      %v846 = vadd.f32 0.0, %v845
      %847 = vmatmul.bf16.gmra.mxu0 %v626
      %v848 = vpop.f32.mrf.mxu0
      %v849 = vadd.f32 0.0, %v848
      %v850 = vpop.f32.mrf.mxu0
      %v851 = vadd.f32 0.0, %v850
      %852 = vmatmul.bf16.gmra.mxu0 %v629
      %v853 = vpop.f32.mrf.mxu0
      %v854 = vadd.f32 0.0, %v853
      %v855 = vpop.f32.mrf.mxu0
      %v856 = vadd.f32 0.0, %v855
      %857 = vmatmul.bf16.gmra.mxu0 %v632
      %v858 = vpop.f32.mrf.mxu0
      %v859 = vadd.f32 0.0, %v858
      %v860 = vpop.f32.mrf.mxu0
      %v861 = vadd.f32 0.0, %v860
      %862 = vmatmul.bf16.gmra.mxu0 %v635
      %v863 = vpop.f32.mrf.mxu0
      %v864 = vadd.f32 0.0, %v863
      %v865 = vpop.f32.mrf.mxu0
      %v866 = vadd.f32 0.0, %v865
      %867 = vmatmul.bf16.gmra.mxu0 %v638
      %v868 = vpop.f32.mrf.mxu0
      %v869 = vadd.f32 0.0, %v868
      %v870 = vpop.f32.mrf.mxu0
      %v871 = vadd.f32 0.0, %v870
      %872 = vmatmul.bf16.gmra.mxu0 %v641
      %v873 = vpop.f32.mrf.mxu0
      %v874 = vadd.f32 0.0, %v873
      %v875 = vpop.f32.mrf.mxu0
      %v876 = vadd.f32 0.0, %v875
      %877 = vmatmul.bf16.gmra.mxu0 %v644
      %v878 = vpop.f32.mrf.mxu0
      %v879 = vadd.f32 0.0, %v878
      %v880 = vpop.f32.mrf.mxu0
      %v881 = vadd.f32 0.0, %v880
      %882 = vmatmul.bf16.gmra.mxu0 %v647
      %v883 = vpop.f32.mrf.mxu0
      %v884 = vadd.f32 0.0, %v883
      %v885 = vpop.f32.mrf.mxu0
      %v886 = vadd.f32 0.0, %v885
      %887 = vmatmul.bf16.gmra.mxu0 %v650
      %v888 = vpop.f32.mrf.mxu0
      %v889 = vadd.f32 0.0, %v888
      %v890 = vpop.f32.mrf.mxu0
      %v891 = vadd.f32 0.0, %v890
      %892 = vmatmul.bf16.gmra.mxu0 %v653
      %v893 = vpop.f32.mrf.mxu0
      %v894 = vadd.f32 0.0, %v893
      %v895 = vpop.f32.mrf.mxu0
      %v896 = vadd.f32 0.0, %v895
      %897 = vmatmul.bf16.gmra.mxu0 %v656
      %v898 = vpop.f32.mrf.mxu0
      %v899 = vadd.f32 0.0, %v898
      %v900 = vpop.f32.mrf.mxu0
      %v901 = vadd.f32 0.0, %v900
      %902 = vmatmul.bf16.gmra.mxu0 %v659
      %v903 = vpop.f32.mrf.mxu0
      %v904 = vadd.f32 0.0, %v903
      %v905 = vpop.f32.mrf.mxu0
      %v906 = vadd.f32 0.0, %v905
      %907 = vmatmul.bf16.gmra.mxu0 %v662
      %v908 = vpop.f32.mrf.mxu0
      %v909 = vadd.f32 0.0, %v908
      %v910 = vpop.f32.mrf.mxu0
      %v911 = vadd.f32 0.0, %v910
      %912 = vmatmul.bf16.gmra.mxu0 %v665
      %v913 = vpop.f32.mrf.mxu0
      %v914 = vadd.f32 0.0, %v913
      %v915 = vpop.f32.mrf.mxu0
      %v916 = vadd.f32 0.0, %v915
      %917 = vmatmul.bf16.gmra.mxu0 %v668
      %v918 = vpop.f32.mrf.mxu0
      %v919 = vadd.f32 0.0, %v918
      %v920 = vpop.f32.mrf.mxu0
      %v921 = vadd.f32 0.0, %v920
      %922 = vmatmul.bf16.gmra.mxu0 %v671
      %v923 = vpop.f32.mrf.mxu0
      %v924 = vadd.f32 0.0, %v923
      %v925 = vpop.f32.mrf.mxu0
      %v926 = vadd.f32 0.0, %v925
      %927 = vmatmul.bf16.gmra.mxu0 %v674
      %v928 = vpop.f32.mrf.mxu0
      %v929 = vadd.f32 0.0, %v928
      %v930 = vpop.f32.mrf.mxu0
      %v931 = vadd.f32 0.0, %v930
      %932 = vmatmul.bf16.gmra.mxu0 %v677
      %v933 = vpop.f32.mrf.mxu0
      %v934 = vadd.f32 0.0, %v933
      %v935 = vpop.f32.mrf.mxu0
      %v936 = vadd.f32 0.0, %v935
      %937 = vmatmul.bf16.gmra.mxu0 %v680
      %v938 = vpop.f32.mrf.mxu0
      %v939 = vadd.f32 0.0, %v938
      %v940 = vpop.f32.mrf.mxu0
      %v941 = vadd.f32 0.0, %v940
      %942 = vmatmul.bf16.gmra.mxu0 %v683
      %v943 = vpop.f32.mrf.mxu0
      %v944 = vadd.f32 0.0, %v943
      %v945 = vpop.f32.mrf.mxu0
      %v946 = vadd.f32 0.0, %v945
      %947 = vmatmul.bf16.gmra.mxu0 %v686
      %v948 = vpop.f32.mrf.mxu0
      %v949 = vadd.f32 0.0, %v948
      %v950 = vpop.f32.mrf.mxu0
      %v951 = vadd.f32 0.0, %v950
      %952 = vmatmul.bf16.gmra.mxu0 %v689
      %v953 = vpop.f32.mrf.mxu0
      %v954 = vadd.f32 0.0, %v953
      %v955 = vpop.f32.mrf.mxu0
      %v956 = vadd.f32 0.0, %v955
      %957 = vmatmul.bf16.gmra.mxu0 %v692
      %v958 = vpop.f32.mrf.mxu0
      %v959 = vadd.f32 0.0, %v958
      %v960 = vpop.f32.mrf.mxu0
      %v961 = vadd.f32 0.0, %v960
      %962 = vmatmul.bf16.gmra.mxu0 %v695
      %v963 = vpop.f32.mrf.mxu0
      %v964 = vadd.f32 0.0, %v963
      %v965 = vpop.f32.mrf.mxu0
      %v966 = vadd.f32 0.0, %v965
      %967 = vmatmul.bf16.gmra.mxu0 %v698
      %v968 = vpop.f32.mrf.mxu0
      %v969 = vadd.f32 0.0, %v968
      %v970 = vpop.f32.mrf.mxu0
      %v971 = vadd.f32 0.0, %v970
      %972 = vmatmul.bf16.gmra.mxu0 %v701
      %v973 = vpop.f32.mrf.mxu0
      %v974 = vadd.f32 0.0, %v973
      %v975 = vpop.f32.mrf.mxu0
      %v976 = vadd.f32 0.0, %v975
      %977 = vmatmul.bf16.gmra.mxu0 %v704
      %v978 = vpop.f32.mrf.mxu0
      %v979 = vadd.f32 0.0, %v978
      %v980 = vpop.f32.mrf.mxu0
      %v981 = vadd.f32 0.0, %v980
      %982 = vmatmul.bf16.gmra.mxu0 %v707
      %v983 = vpop.f32.mrf.mxu0
      %v984 = vadd.f32 0.0, %v983
      %v985 = vpop.f32.mrf.mxu0
      %v986 = vadd.f32 0.0, %v985
      %987 = vmatmul.bf16.gmra.mxu0 %v710
      %v988 = vpop.f32.mrf.mxu0
      %v989 = vadd.f32 0.0, %v988
      %v990 = vpop.f32.mrf.mxu0
      %v991 = vadd.f32 0.0, %v990
      %992 = vmatmul.bf16.gmra.mxu0 %v713
      %v993 = vpop.f32.mrf.mxu0
      %v994 = vadd.f32 0.0, %v993
      %v995 = vpop.f32.mrf.mxu0
      %v996 = vadd.f32 0.0, %v995
      %997 = vmatmul.bf16.gmra.mxu0 %v716
      %v998 = vpop.f32.mrf.mxu0
      %v999 = vadd.f32 0.0, %v998
      %v1000 = vpop.f32.mrf.mxu0
      %v1001 = vadd.f32 0.0, %v1000
      %1002 = vmatmul.bf16.gmra.mxu0 %v719
      %v1003 = vpop.f32.mrf.mxu0
      %v1004 = vadd.f32 0.0, %v1003
      %v1005 = vpop.f32.mrf.mxu0
      %v1006 = vadd.f32 0.0, %v1005
      %1007 = vmatmul.bf16.gmra.mxu0 %v722
      %v1008 = vpop.f32.mrf.mxu0
      %v1009 = vadd.f32 0.0, %v1008
      %v1010 = vpop.f32.mrf.mxu0
      %v1011 = vadd.f32 0.0, %v1010
      %1012 = vmatmul.bf16.gmra.mxu0 %v725
      %v1013 = vpop.f32.mrf.mxu0
      %v1014 = vadd.f32 0.0, %v1013
      %v1015 = vpop.f32.mrf.mxu0
      %v1016 = vadd.f32 0.0, %v1015
      %1017 = vmatmul.bf16.gmra.mxu0 %v728
      %v1018 = vpop.f32.mrf.mxu0
      %v1019 = vadd.f32 0.0, %v1018
      %v1020 = vpop.f32.mrf.mxu0
      %v1021 = vadd.f32 0.0, %v1020
      %1022 = vmatmul.bf16.gmra.mxu0 %v731
      %v1023 = vpop.f32.mrf.mxu0
      %v1024 = vadd.f32 0.0, %v1023
      %v1025 = vpop.f32.mrf.mxu0
      %v1026 = vadd.f32 0.0, %v1025
      %1027 = vmatmul.bf16.gmra.mxu0 %v734
      %v1028 = vpop.f32.mrf.mxu0
      %v1029 = vadd.f32 0.0, %v1028
      %v1030 = vpop.f32.mrf.mxu0
      %v1031 = vadd.f32 0.0, %v1030
      %1032 = vmatmul.bf16.gmra.mxu0 %v737
      %v1033 = vpop.f32.mrf.mxu0
      %v1034 = vadd.f32 0.0, %v1033
      %v1035 = vpop.f32.mrf.mxu0
      %v1036 = vadd.f32 0.0, %v1035
      %1037 = vmatmul.bf16.gmra.mxu0 %v740
      %v1038 = vpop.f32.mrf.mxu0
      %v1039 = vadd.f32 0.0, %v1038
      %v1040 = vpop.f32.mrf.mxu0
      %v1041 = vadd.f32 0.0, %v1040
      %1042 = vmatmul.bf16.gmra.mxu0 %v743
      %v1043 = vpop.f32.mrf.mxu0
      %v1044 = vadd.f32 0.0, %v1043
      %v1045 = vpop.f32.mrf.mxu0
      %v1046 = vadd.f32 0.0, %v1045
      %1047 = vmatmul.bf16.gmra.mxu0 %v746
      %v1048 = vpop.f32.mrf.mxu0
      %v1049 = vadd.f32 0.0, %v1048
      %v1050 = vpop.f32.mrf.mxu0
      %v1051 = vadd.f32 0.0, %v1050
      %1052 = vmatmul.bf16.gmra.mxu0 %v749
      %v1053 = vpop.f32.mrf.mxu0
      %v1054 = vadd.f32 0.0, %v1053
      %v1055 = vpop.f32.mrf.mxu0
      %v1056 = vadd.f32 0.0, %v1055
      %1057 = vmatmul.bf16.gmra.mxu0 %v752
      %v1058 = vpop.f32.mrf.mxu0
      %v1059 = vadd.f32 0.0, %v1058
      %v1060 = vpop.f32.mrf.mxu0
      %v1061 = vadd.f32 0.0, %v1060
      %1062 = vmatmul.bf16.gmra.mxu0 %v755
      %v1063 = vpop.f32.mrf.mxu0
      %v1064 = vadd.f32 0.0, %v1063
      %v1065 = vpop.f32.mrf.mxu0
      %v1066 = vadd.f32 0.0, %v1065
      %1067 = vmatmul.bf16.gmra.mxu0 %v758
      %v1068 = vpop.f32.mrf.mxu0
      %v1069 = vadd.f32 0.0, %v1068
      %v1070 = vpop.f32.mrf.mxu0
      %v1071 = vadd.f32 0.0, %v1070
      %1072 = vmatmul.bf16.gmra.mxu0 %v761
      %v1073 = vpop.f32.mrf.mxu0
      %v1074 = vadd.f32 0.0, %v1073
      %v1075 = vpop.f32.mrf.mxu0
      %v1076 = vadd.f32 0.0, %v1075
      %1077 = vmatmul.bf16.gmra.mxu0 %v764
      %v1078 = vpop.f32.mrf.mxu0
      %v1079 = vadd.f32 0.0, %v1078
      %v1080 = vpop.f32.mrf.mxu0
      %v1081 = vadd.f32 0.0, %v1080
      %1082 = vmatmul.bf16.gmra.mxu0 %v767
      %v1083 = vpop.f32.mrf.mxu0
      %v1084 = vadd.f32 0.0, %v1083
      %v1085 = vpop.f32.mrf.mxu0
      %v1086 = vadd.f32 0.0, %v1085
      %1087 = vmatmul.bf16.gmra.mxu0 %v770
      %v1088 = vpop.f32.mrf.mxu0
      %v1089 = vadd.f32 0.0, %v1088
      %v1090 = vpop.f32.mrf.mxu0
      %v1091 = vadd.f32 0.0, %v1090
      %1092 = vmatmul.bf16.gmra.mxu0 %v773
      %v1093 = vpop.f32.mrf.mxu0
      %v1094 = vadd.f32 0.0, %v1093
      %v1095 = vpop.f32.mrf.mxu0
      %v1096 = vadd.f32 0.0, %v1095
      %1097 = vmatmul.bf16.gmra.mxu0 %v776
      %v1098 = vpop.f32.mrf.mxu0
      %v1099 = vadd.f32 0.0, %v1098
      %v1100 = vpop.f32.mrf.mxu0
      %v1101 = vadd.f32 0.0, %v1100
      %1102 = vmatmul.bf16.gmra.mxu0 %v779
      %v1103 = vpop.f32.mrf.mxu0
      %v1104 = vadd.f32 0.0, %v1103
      %v1105 = vpop.f32.mrf.mxu0
      %v1106 = vadd.f32 0.0, %v1105
      %1107 = vmatmul.bf16.gmra.mxu0 %v782
      %v1108 = vpop.f32.mrf.mxu0
      %v1109 = vadd.f32 0.0, %v1108
      %v1110 = vpop.f32.mrf.mxu0
      %v1111 = vadd.f32 0.0, %v1110
      %1112 = vmatmul.bf16.gmra.mxu0 %v785
      %v1113 = vpop.f32.mrf.mxu0
      %v1114 = vadd.f32 0.0, %v1113
      %v1115 = vpop.f32.mrf.mxu0
      %v1116 = vadd.f32 0.0, %v1115
      %1117 = vmatmul.bf16.gmra.mxu0 %v788
      %v1118 = vpop.f32.mrf.mxu0
      %v1119 = vadd.f32 0.0, %v1118
      %v1120 = vpop.f32.mrf.mxu0
      %v1121 = vadd.f32 0.0, %v1120
      %1122 = vdwg.mxu0
      %1123 = vst [vmem:[%s145] sm:$0xff] %v804
      %1124 = vst [vmem:[%s145 + $0x8] sm:$0xff] %v806
      %1125 = vst [vmem:[%s145 + $0x10] sm:$0xff] %v809
      %1126 = vst [vmem:[%s145 + $0x18] sm:$0xff] %v811
      %1127 = vst [vmem:[%s145 + $0x20] sm:$0xff] %v814
      %1128 = vst [vmem:[%s145 + $0x28] sm:$0xff] %v816
      %1129 = vst [vmem:[%s145 + $0x30] sm:$0xff] %v819
      %1130 = vst [vmem:[%s145 + $0x38] sm:$0xff] %v821
      %1131 = vst [vmem:[%s145 + $0x40] sm:$0xff] %v824
      %1132 = vst [vmem:[%s145 + $0x48] sm:$0xff] %v826
      %1133 = vst [vmem:[%s145 + $0x50] sm:$0xff] %v829
      %1134 = vst [vmem:[%s145 + $0x58] sm:$0xff] %v831
      %1135 = vst [vmem:[%s145 + $0x60] sm:$0xff] %v834
      %1136 = vst [vmem:[%s145 + $0x68] sm:$0xff] %v836
      %1137 = vst [vmem:[%s145 + $0x70] sm:$0xff] %v839
      %1138 = vst [vmem:[%s145 + $0x78] sm:$0xff] %v841
      %1139 = vst [vmem:[%s145 + $0x80] sm:$0xff] %v844
      %1140 = vst [vmem:[%s145 + $0x88] sm:$0xff] %v846
      %1141 = vst [vmem:[%s145 + $0x90] sm:$0xff] %v849
      %1142 = vst [vmem:[%s145 + $0x98] sm:$0xff] %v851
      %1143 = vst [vmem:[%s145 + $0xa0] sm:$0xff] %v854
      %1144 = vst [vmem:[%s145 + $0xa8] sm:$0xff] %v856
      %1145 = vst [vmem:[%s145 + $0xb0] sm:$0xff] %v859
      %1146 = vst [vmem:[%s145 + $0xb8] sm:$0xff] %v861
      %1147 = vst [vmem:[%s145 + $0xc0] sm:$0xff] %v864
      %1148 = vst [vmem:[%s145 + $0xc8] sm:$0xff] %v866
      %1149 = vst [vmem:[%s145 + $0xd0] sm:$0xff] %v869
      %1150 = vst [vmem:[%s145 + $0xd8] sm:$0xff] %v871
      %1151 = vst [vmem:[%s145 + $0xe0] sm:$0xff] %v874
      %1152 = vst [vmem:[%s145 + $0xe8] sm:$0xff] %v876
      %1153 = vst [vmem:[%s145 + $0xf0] sm:$0xff] %v879
      %1154 = vst [vmem:[%s145 + $0xf8] sm:$0xff] %v881
      %1155 = vst [vmem:[%s145 + $0x100] sm:$0xff] %v884
      %1156 = vst [vmem:[%s145 + $0x108] sm:$0xff] %v886
      %1157 = vst [vmem:[%s145 + $0x110] sm:$0xff] %v889
      %1158 = vst [vmem:[%s145 + $0x118] sm:$0xff] %v891
      %1159 = vst [vmem:[%s145 + $0x120] sm:$0xff] %v894
      %1160 = vst [vmem:[%s145 + $0x128] sm:$0xff] %v896
      %1161 = vst [vmem:[%s145 + $0x130] sm:$0xff] %v899
      %1162 = vst [vmem:[%s145 + $0x138] sm:$0xff] %v901
      %1163 = vst [vmem:[%s145 + $0x140] sm:$0xff] %v904
      %1164 = vst [vmem:[%s145 + $0x148] sm:$0xff] %v906
      %1165 = vst [vmem:[%s145 + $0x150] sm:$0xff] %v909
      %1166 = vst [vmem:[%s145 + $0x158] sm:$0xff] %v911
      %1167 = vst [vmem:[%s145 + $0x160] sm:$0xff] %v914
      %1168 = vst [vmem:[%s145 + $0x168] sm:$0xff] %v916
      %1169 = vst [vmem:[%s145 + $0x170] sm:$0xff] %v919
      %1170 = vst [vmem:[%s145 + $0x178] sm:$0xff] %v921
      %1171 = vst [vmem:[%s145 + $0x180] sm:$0xff] %v924
      %1172 = vst [vmem:[%s145 + $0x188] sm:$0xff] %v926
      %1173 = vst [vmem:[%s145 + $0x190] sm:$0xff] %v929
      %1174 = vst [vmem:[%s145 + $0x198] sm:$0xff] %v931
      %1175 = vst [vmem:[%s145 + $0x1a0] sm:$0xff] %v934
      %1176 = vst [vmem:[%s145 + $0x1a8] sm:$0xff] %v936
      %1177 = vst [vmem:[%s145 + $0x1b0] sm:$0xff] %v939
      %1178 = vst [vmem:[%s145 + $0x1b8] sm:$0xff] %v941
      %1179 = vst [vmem:[%s145 + $0x1c0] sm:$0xff] %v944
      %1180 = vst [vmem:[%s145 + $0x1c8] sm:$0xff] %v946
      %1181 = vst [vmem:[%s145 + $0x1d0] sm:$0xff] %v949
      %1182 = vst [vmem:[%s145 + $0x1d8] sm:$0xff] %v951
      %1183 = vst [vmem:[%s145 + $0x1e0] sm:$0xff] %v954
      %1184 = vst [vmem:[%s145 + $0x1e8] sm:$0xff] %v956
      %1185 = vst [vmem:[%s145 + $0x1f0] sm:$0xff] %v959
      %1186 = vst [vmem:[%s145 + $0x1f8] sm:$0xff] %v961
      %1187 = vst [vmem:[%s145 + $0x200] sm:$0xff] %v964
      %1188 = vst [vmem:[%s145 + $0x208] sm:$0xff] %v966
      %1189 = vst [vmem:[%s145 + $0x210] sm:$0xff] %v969
      %1190 = vst [vmem:[%s145 + $0x218] sm:$0xff] %v971
      %1191 = vst [vmem:[%s145 + $0x220] sm:$0xff] %v974
      %1192 = vst [vmem:[%s145 + $0x228] sm:$0xff] %v976
      %1193 = vst [vmem:[%s145 + $0x230] sm:$0xff] %v979
      %1194 = vst [vmem:[%s145 + $0x238] sm:$0xff] %v981
      %1195 = vst [vmem:[%s145 + $0x240] sm:$0xff] %v984
      %1196 = vst [vmem:[%s145 + $0x248] sm:$0xff] %v986
      %1197 = vst [vmem:[%s145 + $0x250] sm:$0xff] %v989
      %1198 = vst [vmem:[%s145 + $0x258] sm:$0xff] %v991
      %1199 = vst [vmem:[%s145 + $0x260] sm:$0xff] %v994
      %1200 = vst [vmem:[%s145 + $0x268] sm:$0xff] %v996
      %1201 = vst [vmem:[%s145 + $0x270] sm:$0xff] %v999
      %1202 = vst [vmem:[%s145 + $0x278] sm:$0xff] %v1001
      %1203 = vst [vmem:[%s145 + $0x280] sm:$0xff] %v1004
      %1204 = vst [vmem:[%s145 + $0x288] sm:$0xff] %v1006
      %1205 = vst [vmem:[%s145 + $0x290] sm:$0xff] %v1009
      %1206 = vst [vmem:[%s145 + $0x298] sm:$0xff] %v1011
      %1207 = vst [vmem:[%s145 + $0x2a0] sm:$0xff] %v1014
      %1208 = vst [vmem:[%s145 + $0x2a8] sm:$0xff] %v1016
      %1209 = vst [vmem:[%s145 + $0x2b0] sm:$0xff] %v1019
      %1210 = vst [vmem:[%s145 + $0x2b8] sm:$0xff] %v1021
      %1211 = vst [vmem:[%s145 + $0x2c0] sm:$0xff] %v1024
      %1212 = vst [vmem:[%s145 + $0x2c8] sm:$0xff] %v1026
      %1213 = vst [vmem:[%s145 + $0x2d0] sm:$0xff] %v1029
      %1214 = vst [vmem:[%s145 + $0x2d8] sm:$0xff] %v1031
      %1215 = vst [vmem:[%s145 + $0x2e0] sm:$0xff] %v1034
      %1216 = vst [vmem:[%s145 + $0x2e8] sm:$0xff] %v1036
      %1217 = vst [vmem:[%s145 + $0x2f0] sm:$0xff] %v1039
      %1218 = vst [vmem:[%s145 + $0x2f8] sm:$0xff] %v1041
      %1219 = vst [vmem:[%s145 + $0x300] sm:$0xff] %v1044
      %1220 = vst [vmem:[%s145 + $0x308] sm:$0xff] %v1046
      %1221 = vst [vmem:[%s145 + $0x310] sm:$0xff] %v1049
      %1222 = vst [vmem:[%s145 + $0x318] sm:$0xff] %v1051
      %1223 = vst [vmem:[%s145 + $0x320] sm:$0xff] %v1054
      %1224 = vst [vmem:[%s145 + $0x328] sm:$0xff] %v1056
      %1225 = vst [vmem:[%s145 + $0x330] sm:$0xff] %v1059
      %1226 = vst [vmem:[%s145 + $0x338] sm:$0xff] %v1061
      %1227 = vst [vmem:[%s145 + $0x340] sm:$0xff] %v1064
      %1228 = vst [vmem:[%s145 + $0x348] sm:$0xff] %v1066
      %1229 = vst [vmem:[%s145 + $0x350] sm:$0xff] %v1069
      %1230 = vst [vmem:[%s145 + $0x358] sm:$0xff] %v1071
      %1231 = vst [vmem:[%s145 + $0x360] sm:$0xff] %v1074
      %1232 = vst [vmem:[%s145 + $0x368] sm:$0xff] %v1076
      %1233 = vst [vmem:[%s145 + $0x370] sm:$0xff] %v1079
      %1234 = vst [vmem:[%s145 + $0x378] sm:$0xff] %v1081
      %1235 = vst [vmem:[%s145 + $0x380] sm:$0xff] %v1084
      %1236 = vst [vmem:[%s145 + $0x388] sm:$0xff] %v1086
      %1237 = vst [vmem:[%s145 + $0x390] sm:$0xff] %v1089
      %1238 = vst [vmem:[%s145 + $0x398] sm:$0xff] %v1091
      %1239 = vst [vmem:[%s145 + $0x3a0] sm:$0xff] %v1094
      %1240 = vst [vmem:[%s145 + $0x3a8] sm:$0xff] %v1096
      %1241 = vst [vmem:[%s145 + $0x3b0] sm:$0xff] %v1099
      %1242 = vst [vmem:[%s145 + $0x3b8] sm:$0xff] %v1101
      %1243 = vst [vmem:[%s145 + $0x3c0] sm:$0xff] %v1104
      %1244 = vst [vmem:[%s145 + $0x3c8] sm:$0xff] %v1106
      %1245 = vst [vmem:[%s145 + $0x3d0] sm:$0xff] %v1109
      %1246 = vst [vmem:[%s145 + $0x3d8] sm:$0xff] %v1111
      %1247 = vst [vmem:[%s145 + $0x3e0] sm:$0xff] %v1114
      %1248 = vst [vmem:[%s145 + $0x3e8] sm:$0xff] %v1116
      %1249 = vst [vmem:[%s145 + $0x3f0] sm:$0xff] %v1119
      %1250 = vst [vmem:[%s145 + $0x3f8] sm:$0xff] %v1121
      %s1251 = smul.u32 128, %s13
      %p1252 = scmp.lt.s32.totalorder %s1251, 255
      %s1253 = scalar_select %p1252, %s1251, 255
      %s1254 = smul.addr %s1253, 8
      %s1255 = scalar_lea.vmem %s2, %s1254
      // Predicated region
      $region29: #{netG_forward.9} parent=27 // pred_check
        %p1256 = pneg %p78
      $region30: #{netG_forward.9} parent=27 // pred_check_branch
        %1258 = sbr.rel (%p1256) target = $region32
      $region31: #{netG_forward.9} parent=27 // pred_region
        %s1259 = smul.u32 128, %s13
      $region32: #{netG_forward.9} parent=27 // pred_fallthru
        _
    $region28: #{netG_forward.9} parent=5 // pred_fallthru
      _
    %p1260 = scmp.le.s32.totalorder 2, %s8
    // Predicated region
    $region33: #{netG_forward.9} parent=5 // pred_check
      %p1261 = pneg %p1260
    $region34: #{netG_forward.9} parent=5 // pred_check_branch
      %1263 = sbr.rel (%p1261) target = $region36
    $region35: #{netG_forward.9} parent=5 // pred_region
      %s1264 = ssub.s32 %s8, 2
      // Predicated region
      $region37: #{netG_forward.9} parent=35 // pred_check
        %p1265 = pneg %p84
      $region38: #{netG_forward.9} parent=35 // pred_check_branch
        %1267 = sbr.rel (%p1265) target = $region40
      $region39: #{netG_forward.9} parent=35 // pred_region
        %s1268 = smul.u32 128, %s14
        %p1269 = scmp.lt.s32.totalorder %s1268, 255
        %s1270 = scalar_select %p1269, %s1268, 255
        %s1271 = smul.addr %s1270, 8
        %s1272 = scalar_lea.vmem %s2, %s1271
      $region40: #{netG_forward.9} parent=35 // pred_fallthru
        _
    $region36: #{netG_forward.9} parent=5 // pred_fallthru
      _
  $region6: #{netG_forward.9} parent=0 // loop_footer
    %s12 = sadd.s32 1, %s8
  $region7: #{netG_forward.9} parent=0 // loop_footer_branch
    %7 = sbr.rel target = $region3
  $region8: #{netG_forward.9} parent=0 // loop_exit
    _

</llo_original>
